<compile_context>
chip_gen: v7x
topology: tpu7x:2x2x1
jax: 0.10.0
libtpu: 0.0.40
codegen_flags: <defaults>
</compile_context>

<pallas_src>
import jax
import jax.numpy as jnp
import numpy as np
from jax.experimental import pallas as pl
from jax.experimental.pallas import tpu as pltpu

# Full-f32 matmul precision everywhere so the f32 kernel path matches the reference
# to ~1e-6.
jax.config.update("jax_default_matmul_precision", "highest")

NEG_SLOPE = 0.01                     # nn.LeakyReLU default negative_slope (SE gate)
BN_EPS = 1e-5                        # nn.BatchNorm3d default eps
VMEM_LIMIT = 40 * 1024 * 1024        # scoped-VMEM limit with headroom on v7x (64 MiB)
ACT_VMEM_BUDGET = 16 * 1024 * 1024   # budget for double-buffered streamed blocks


def _spatial_tile(S, streamed_channels, itemsize):
    """Largest multiple-of-128 spatial tile that divides S and whose double-buffered
    streamed blocks (sum of channel counts of all streamed arrays) fit the activation
    VMEM budget; returns S itself if it fits (or nothing else divides)."""
    bytes_per_pos = 2 * streamed_channels * itemsize          # x2: double buffering
    max_st = max(128, ACT_VMEM_BUDGET // max(1, bytes_per_pos))
    if S <= max_st:
        return S
    t = (max_st // 128) * 128
    while t >= 128:
        if S % t == 0:
            return t
        t -= 128
    # TODO(synk): no multiple-of-128 tile divides S within the budget; fall back to the
    # full spatial extent (keeps the lane constraint, may exceed the VMEM budget).
    return S


# ---------------------------------------------------------------------------
# Kernel 1: conv1 1x1x1 (bn1 scale pre-folded into the weights) + bias + PReLU.
# ---------------------------------------------------------------------------
def conv1_bn_prelu_kernel(x_ref, w_ref, b_ref, a_ref, o_ref):
    x = x_ref[0].astype(jnp.float32)                                    # (Cin, St)
    y = jnp.dot(w_ref[...], x, preferred_element_type=jnp.float32)     # (Cout, St)
    y = y + b_ref[...]
    y = jnp.where(y > 0, y, a_ref[...] * y)                             # PReLU
    o_ref[0] = y.astype(o_ref.dtype)


def conv1_bn_prelu(x3, w_folded, bias, alpha, *, st):
    B, Cin, S = x3.shape
    Cout = w_folded.shape[0]
    assert S % st == 0
    return pl.pallas_call(
        conv1_bn_prelu_kernel,
        out_shape=jax.ShapeDtypeStruct((B, Cout, S), x3.dtype),
        grid=(B, S // st),
        in_specs=[
            pl.BlockSpec((1, Cin, st), lambda b, j: (b, 0, j)),
            pl.BlockSpec((Cout, Cin), lambda b, j: (0, 0)),   # resident weights
            pl.BlockSpec((Cout, 1), lambda b, j: (0, 0)),
            pl.BlockSpec((1, 1), lambda b, j: (0, 0)),
        ],
        out_specs=pl.BlockSpec((1, Cout, st), lambda b, j: (b, 0, j)),
        compiler_params=pltpu.CompilerParams(
            dimension_semantics=("parallel", "parallel"),
            vmem_limit_bytes=VMEM_LIMIT),
    )(x3, w_folded, bias, alpha)


# ---------------------------------------------------------------------------
# Kernel 2: bn2 affine + PReLU -> conv3 1x1x1 (bn3 scale pre-folded) + bias,
# with the SE pooled sum accumulated into a tiny (1, C2, 1) output block that is
# resident across the "arbitrary" spatial axis (batch axis stays "parallel").
# ---------------------------------------------------------------------------
def bn_prelu_conv3_se_kernel(x_ref, w_ref, si_ref, bi_ref, a_ref, bo_ref,
                             y_ref, gsum_ref):
    x = x_ref[0].astype(jnp.float32)                   # (Cmid, St)
    x = x * si_ref[...] + bi_ref[...]                  # folded bn2
    x = jnp.where(x > 0, x, a_ref[...] * x)            # PReLU
    y = jnp.dot(w_ref[...], x, preferred_element_type=jnp.float32) + bo_ref[...]
    y_ref[0] = y.astype(y_ref.dtype)

    @pl.when(pl.program_id(1) == 0)
    def _init():
        gsum_ref[...] = jnp.zeros_like(gsum_ref)

    gsum_ref[...] += jnp.sum(y, axis=-1, keepdims=True)[None]   # (1, C2, 1) f32


def bn_prelu_conv3_bn_se(o2, w_folded, s_in, b_in, alpha, bias_out, *, st):
    B, Cmid, S2 = o2.shape
    C2 = w_folded.shape[0]
    assert S2 % st == 0
    y3, gsum = pl.pallas_call(
        bn_prelu_conv3_se_kernel,
        out_shape=(jax.ShapeDtypeStruct((B, C2, S2), o2.dtype),
                   jax.ShapeDtypeStruct((B, C2, 1), jnp.float32)),
        grid=(B, S2 // st),
        in_specs=[
            pl.BlockSpec((1, Cmid, st), lambda b, j: (b, 0, j)),
            pl.BlockSpec((C2, Cmid), lambda b, j: (0, 0)),
            pl.BlockSpec((Cmid, 1), lambda b, j: (0, 0)),
            pl.BlockSpec((Cmid, 1), lambda b, j: (0, 0)),
            pl.BlockSpec((1, 1), lambda b, j: (0, 0)),
            pl.BlockSpec((C2, 1), lambda b, j: (0, 0)),
        ],
        out_specs=(pl.BlockSpec((1, C2, st), lambda b, j: (b, 0, j)),
                   pl.BlockSpec((1, C2, 1), lambda b, j: (b, 0, 0))),
        compiler_params=pltpu.CompilerParams(
            dimension_semantics=("parallel", "arbitrary"),
            vmem_limit_bytes=VMEM_LIMIT),
    )(o2, w_folded, s_in, b_in, alpha, bias_out)
    return y3, gsum[:, :, 0]                            # (B, C2, S2), (B, C2)


# ---------------------------------------------------------------------------
# Kernel 3: residual 1x1x1 conv (+ folded BN) computed in-kernel, SE gate scale,
# residual add, final PReLU.  No materialized residual tensor in HBM.
# ---------------------------------------------------------------------------
def se_scale_residual_kernel(y_ref, g_ref, xr_ref, wr_ref, br_ref, a_ref, o_ref):
    y = y_ref[0].astype(jnp.float32)                    # (C2, St)
    g = g_ref[0]                                        # (C2, 1) f32
    xr = xr_ref[0].astype(jnp.float32)                  # (Cin, St)
    res = jnp.dot(wr_ref[...], xr, preferred_element_type=jnp.float32) + br_ref[...]
    out = y * g + res
    out = jnp.where(out > 0, out, a_ref[...] * out)     # final PReLU
    o_ref[0] = out.astype(o_ref.dtype)


def se_scale_residual_prelu(y3, gate, xr3, wr_folded, bias_r, alpha, *, st):
    B, C2, S2 = y3.shape
    Cin = xr3.shape[1]
    assert S2 % st == 0
    g3 = gate.reshape(B, C2, 1).astype(jnp.float32)
    return pl.pallas_call(
        se_scale_residual_kernel,
        out_shape=jax.ShapeDtypeStruct((B, C2, S2), y3.dtype),
        grid=(B, S2 // st),
        in_specs=[
            pl.BlockSpec((1, C2, st), lambda b, j: (b, 0, j)),
            pl.BlockSpec((1, C2, 1), lambda b, j: (b, 0, 0)),
            pl.BlockSpec((1, Cin, st), lambda b, j: (b, 0, j)),
            pl.BlockSpec((C2, Cin), lambda b, j: (0, 0)),
            pl.BlockSpec((C2, 1), lambda b, j: (0, 0)),
            pl.BlockSpec((1, 1), lambda b, j: (0, 0)),
        ],
        out_specs=pl.BlockSpec((1, C2, st), lambda b, j: (b, 0, j)),
        compiler_params=pltpu.CompilerParams(
            dimension_semantics=("parallel", "parallel"),
            vmem_limit_bytes=VMEM_LIMIT),
    )(y3, g3, xr3, wr_folded, bias_r, alpha)


# ---------------------------------------------------------------------------
# Full module forward (eval-mode BatchNorm folded into per-channel scale/bias).
# ---------------------------------------------------------------------------
def senet_dilated_bottleneck(x, p, *, cardinality, stride=1, spatial_tile=None,
                             stream_dtype=jnp.float32):
    B, Cin, D, H, W = x.shape
    Cmid = p["w1"].shape[0]
    C2 = p["w3"].shape[0]
    itemsize = jnp.dtype(stream_dtype).itemsize

    def fold(bn):
        g, b, m, v = bn
        s = g / jnp.sqrt(v + BN_EPS)
        t = b - m * s
        return s.reshape(-1, 1), t.reshape(-1, 1)

    s1, t1 = fold(p["bn1"])
    s2, t2 = fold(p["bn2"])
    s3, t3 = fold(p["bn3"])
    sr, tr = fold(p["bn_r"])

    # Fold output BN scales into the 1x1x1 conv weights at trace time (W' = s * W).
    w1f = (s1 * p["w1"]).astype(jnp.float32)
    w3f = (s3 * p["w3"]).astype(jnp.float32)
    wrf = (sr * p["w_r"]).astype(jnp.float32)

    alpha = jnp.full((1, 1), p["alpha"], jnp.float32)   # shared PReLU parameter

    S = D * H * W
    x3 = x.reshape(B, Cin, S).astype(stream_dtype)

    def pick_tile(s_len, streamed_chans):
        if spatial_tile and s_len % spatial_tile == 0 and (
                spatial_tile % 128 == 0 or spatial_tile == s_len):
            return spatial_tile
        return _spatial_tile(s_len, streamed_chans, itemsize)

    # K1: conv1 -> bn1 -> PReLU (streams Cin in + Cmid out per spatial position)
    st_in = pick_tile(S, Cin + Cmid)
    out1 = conv1_bn_prelu(x3, w1f, t1, alpha, st=st_in)

    # TODO(synk): dilated grouped 3x3x3 Conv3d (conv2) kept as an XLA conv; no clean
    # Pallas equivalent implemented here.
    out2 = jax.lax.conv_general_dilated(
        out1.reshape(B, Cmid, D, H, W), p["w2"].astype(out1.dtype),
        window_strides=(stride,) * 3, padding=[(2, 2)] * 3,
        rhs_dilation=(2, 2, 2), feature_group_count=cardinality,
        dimension_numbers=("NCDHW", "OIDHW", "NCDHW"))
    _, _, D2, H2, W2 = out2.shape
    S2 = D2 * H2 * W2
    o2 = out2.reshape(B, Cmid, S2).astype(stream_dtype)

    st_out = pick_tile(S2, max(Cmid + C2, 2 * C2 + Cin))

    # K2: bn2 -> PReLU -> conv3 -> bn3, SE pooled sum accumulated in-kernel.
    y3, gsum = bn_prelu_conv3_bn_se(o2, w3f, s2, t2, alpha, t3, st=st_out)

    # SE gate fc1 -> LeakyReLU -> fc2 -> sigmoid on (B, C2): trivially small, plain JAX.
    pooled = gsum * (1.0 / float(S2))
    h = pooled @ p["se_w1"] + p["se_b1"]
    h = jnp.where(h > 0, h, NEG_SLOPE * h)
    gate = jax.nn.sigmoid(h @ p["se_w2"] + p["se_b2"])

    # K3: residual conv + BN (in-kernel) + SE scale + add + final PReLU.
    # TODO(synk): for stride != 1 the residual subsample is still an XLA strided slice
    # (the stride is not folded into the residual BlockSpec index_map here).
    xr3 = x3 if stride == 1 else \
        x[:, :, ::stride, ::stride, ::stride].reshape(B, Cin, S2).astype(stream_dtype)
    out = se_scale_residual_prelu(y3, gate, xr3, wrf, tr, alpha, st=st_out)
    return out.reshape(B, C2, D2, H2, W2)


# ---------------------------------------------------------------------------
# Pure-JAX reference (mirrors the PyTorch forward, eval-mode BN).
# ---------------------------------------------------------------------------
def reference_forward(x, p, *, cardinality, stride=1):
    a = p["alpha"]

    def bn(y, bnp):
        g, b, m, v = bnp
        sh = (1, -1, 1, 1, 1)
        return (y - m.reshape(sh)) * (g / jnp.sqrt(v + BN_EPS)).reshape(sh) + b.reshape(sh)

    def prelu(y):
        return jnp.where(y > 0, y, a * y)

    def conv1x1(y, w, s=1):
        if s != 1:
            y = y[:, :, ::s, ::s, ::s]
        return jnp.einsum("oc,bcdhw->bodhw", w, y)

    residual = bn(conv1x1(x, p["w_r"], stride), p["bn_r"])

    out = prelu(bn(conv1x1(x, p["w1"]), p["bn1"]))
    out = jax.lax.conv_general_dilated(
        out, p["w2"], window_strides=(stride,) * 3, padding=[(2, 2)] * 3,
        rhs_dilation=(2, 2, 2), feature_group_count=cardinality,
        dimension_numbers=("NCDHW", "OIDHW", "NCDHW"))
    out = prelu(bn(out, p["bn2"]))
    out = bn(conv1x1(out, p["w3"]), p["bn3"])

    # SELayer3D
    pooled = out.mean(axis=(2, 3, 4))
    h = pooled @ p["se_w1"] + p["se_b1"]
    h = jnp.where(h > 0, h, NEG_SLOPE * h)
    g = jax.nn.sigmoid(h @ p["se_w2"] + p["se_b2"])
    out = out * g[:, :, None, None, None]

    return prelu(out + residual)


if __name__ == "__main__":
    # SENetDilatedBottleneck(inplanes=16, out_planes=16, cardinality=4, stride=1, expansion=2)
    B, Cin = 2, 16
    out_planes, cardinality, expansion, reduction = 16, 4, 2, 16
    stride = 1
    D, H, W = 4, 8, 16                 # S = 512 -> single full-S spatial tile
    Cmid = out_planes
    C2 = out_planes * expansion        # 32
    hid = C2 // reduction              # 2

    key = jax.random.PRNGKey(0)
    kit = iter(jax.random.split(key, 32))

    def nrm(shape, scale=0.1):
        return jax.random.normal(next(kit), shape, dtype=jnp.float32) * scale

    def bn_params(C):
        return (1.0 + nrm((C,)),                                            # gamma
                nrm((C,)),                                                  # beta
                nrm((C,)),                                                  # running mean
                0.5 + jax.random.uniform(next(kit), (C,), dtype=jnp.float32))  # running var

    x = jax.random.normal(next(kit), (B, Cin, D, H, W), dtype=jnp.float32)

    p = dict(
        w1=nrm((Cmid, Cin), 0.2),                            # conv1 1x1x1 weight
        bn1=bn_params(Cmid),
        w2=nrm((Cmid, Cmid // cardinality, 3, 3, 3), 0.1),   # conv2 dilated grouped weight
        bn2=bn_params(Cmid),
        w3=nrm((C2, Cmid), 0.2),                             # conv3 1x1x1 weight
        bn3=bn_params(C2),
        w_r=nrm((C2, Cin), 0.2),                             # self.conv / down_sample weight
        bn_r=bn_params(C2),
        alpha=0.25,                                          # nn.PReLU shared parameter
        se_w1=nrm((C2, hid), 0.3),                           # SE fc1 weight, stored (in, out)
        se_b1=nrm((1, hid), 0.1),
        se_w2=nrm((hid, C2), 0.3),                           # SE fc2 weight, stored (in, out)
        se_b2=nrm((1, C2), 0.1),
    )

    ref = jax.block_until_ready(reference_forward(x, p, cardinality=cardinality,
                                                  stride=stride))

    # f32 activation streaming: tight check against the pure-JAX reference.
    out_f32 = jax.block_until_ready(
        senet_dilated_bottleneck(x, p, cardinality=cardinality, stride=stride))
    assert out_f32.shape == ref.shape == (B, C2, D, H, W)
    np.testing.assert_allclose(np.asarray(out_f32), np.asarray(ref),
                               rtol=2e-4, atol=2e-4)

    # bf16 activation streaming (review item): same kernels, half the HBM bytes;
    # matmuls / SE sum still accumulate in f32, so only a loose check applies.
    out_bf16 = jax.block_until_ready(
        senet_dilated_bottleneck(x, p, cardinality=cardinality, stride=stride,
                                 stream_dtype=jnp.bfloat16))
    np.testing.assert_allclose(np.asarray(out_bf16.astype(jnp.float32)),
                               np.asarray(ref), rtol=1e-1, atol=1e-1)

    print("KERNEL_OK")
</pallas_src>

<mosaic_0001>
module attributes {stable_mosaic.version = 11 : i64} {
  func.func @conv1_bn_prelu_kernel(%arg0: i32, %arg1: i32, %arg2: memref<1x16x512xf32, #tpu.memory_space<vmem>>, %arg3: memref<16x16xf32, #tpu.memory_space<vmem>>, %arg4: memref<16x1xf32, #tpu.memory_space<vmem>>, %arg5: memref<1x1xf32, #tpu.memory_space<vmem>>, %arg6: memref<1x16x512xf32, #tpu.memory_space<vmem>>) attributes {dimension_semantics = [#tpu.dimension_semantics<parallel>, #tpu.dimension_semantics<parallel>], iteration_bounds = array<i64: 2, 1>, scalar_prefetch = 0 : i64, scratch_operands = 0 : i64, tpu.core_type = #tpu.core_type<tc>, window_params = [{transform_indices = @transform_0, window_bounds = array<i64: 1, 16, 512>}, {pipeline_mode = #tpu.pipeline_mode<synchronous>, transform_indices = @transform_1, window_bounds = array<i64: 16, 16>}, {pipeline_mode = #tpu.pipeline_mode<synchronous>, transform_indices = @transform_2, window_bounds = array<i64: 16, 1>}, {pipeline_mode = #tpu.pipeline_mode<synchronous>, transform_indices = @transform_3, window_bounds = array<i64: 1, 1>}, {transform_indices = @transform_4, window_bounds = array<i64: 1, 16, 512>}]} {
    %c0 = arith.constant 0 : index
    %c0_0 = arith.constant 0 : index
    %c0_1 = arith.constant 0 : index
    %0 = vector.load %arg2[%c0, %c0_0, %c0_1] : memref<1x16x512xf32, #tpu.memory_space<vmem>>, vector<1x16x512xf32>
    %1 = vector.shape_cast %0 : vector<1x16x512xf32> to vector<16x512xf32>
    %c0_2 = arith.constant 0 : index
    %c0_3 = arith.constant 0 : index
    %2 = vector.load %arg3[%c0_2, %c0_3] : memref<16x16xf32, #tpu.memory_space<vmem>>, vector<16x16xf32>
    %cst = arith.constant dense<0.000000e+00> : vector<16x512xf32>
    %3 = tpu.matmul %2, %1, %cst {dimension_numbers = #tpu.dot_dimension_numbers<[1], [0], [0], [1], [0, 0, 1, 1], [], []>, precision = #tpu.contract_precision<fp32>} : vector<16x16xf32>, vector<16x512xf32>, vector<16x512xf32> -> vector<16x512xf32>
    %c0_4 = arith.constant 0 : index
    %c0_5 = arith.constant 0 : index
    %4 = vector.load %arg4[%c0_4, %c0_5] : memref<16x1xf32, #tpu.memory_space<vmem>>, vector<16x1xf32>
    %5 = vector.broadcast %4 : vector<16x1xf32> to vector<16x512xf32>
    %6 = arith.addf %3, %5 : vector<16x512xf32>
    %cst_6 = arith.constant 0.000000e+00 : f32
    %7 = vector.broadcast %cst_6 : f32 to vector<16x512xf32>
    %8 = arith.cmpf ogt, %6, %7 : vector<16x512xf32>
    %c0_7 = arith.constant 0 : index
    %c0_8 = arith.constant 0 : index
    %9 = vector.load %arg5[%c0_7, %c0_8] : memref<1x1xf32, #tpu.memory_space<vmem>>, vector<1x1xf32>
    %10 = vector.broadcast %9 : vector<1x1xf32> to vector<16x512xf32>
    %11 = arith.mulf %10, %6 : vector<16x512xf32>
    %12 = arith.select %8, %6, %11 : vector<16x512xi1>, vector<16x512xf32>
    %c0_9 = arith.constant 0 : index
    %c0_10 = arith.constant 0 : index
    %c0_11 = arith.constant 0 : index
    %13 = vector.load %arg6[%c0_9, %c0_10, %c0_11] : memref<1x16x512xf32, #tpu.memory_space<vmem>>, vector<1x16x512xf32>
    %14 = vector.shape_cast %13 : vector<1x16x512xf32> to vector<16x512xf32>
    %15 = vector.shape_cast %12 : vector<16x512xf32> to vector<1x16x512xf32>
    tpu.vector_store %arg6[%c0_9, %c0_10, %c0_11], %15 {strides = array<i32>} : memref<1x16x512xf32, #tpu.memory_space<vmem>>, vector<1x16x512xf32>,
    return
  }
  func.func @transform_0(%arg0: i32, %arg1: i32) -> (i32, i32, i32) {
    %c0_i32 = arith.constant 0 : i32
    %c0_i32_0 = arith.constant 0 : i32
    return %arg0, %c0_i32, %arg1 : i32, i32, i32
  }
  func.func @transform_1(%arg0: i32, %arg1: i32) -> (i32, i32) {
    %c0_i32 = arith.constant 0 : i32
    %c0_i32_0 = arith.constant 0 : i32
    %c0_i32_1 = arith.constant 0 : i32
    return %c0_i32, %c0_i32_0 : i32, i32
  }
  func.func @transform_2(%arg0: i32, %arg1: i32) -> (i32, i32) {
    %c0_i32 = arith.constant 0 : i32
    %c0_i32_0 = arith.constant 0 : i32
    %c0_i32_1 = arith.constant 0 : i32
    return %c0_i32, %c0_i32_0 : i32, i32
  }
  func.func @transform_3(%arg0: i32, %arg1: i32) -> (i32, i32) {
    %c0_i32 = arith.constant 0 : i32
    %c0_i32_0 = arith.constant 0 : i32
    %c0_i32_1 = arith.constant 0 : i32
    return %c0_i32, %c0_i32_0 : i32, i32
  }
  func.func @transform_4(%arg0: i32, %arg1: i32) -> (i32, i32, i32) {
    %c0_i32 = arith.constant 0 : i32
    %c0_i32_0 = arith.constant 0 : i32
    return %arg0, %c0_i32, %arg1 : i32, i32, i32
  }
}

</mosaic_0001>

<llo_original>
// kernel: tpu_custom_call.1
$region0: #{tpu_custom_call.1}
  #allocation0 [shape = 'u32[]', space=smem, size = 0x4, offset = 0x4, fixed_abs, tag = 'smem constant byte address 0x4 - core index']
  #allocation1 [shape = 'u32[144,128]{1,0:T(1,128)}', space=vmem, size = 0x12000, scoped, tag = 'internal scratch']
  #allocation2 [shape = 'f32[1,1]{1,0:T(1,128)S(1)}', space=vmem, size = 0x200, scoped, tag = 'scoped memory for tpu_custom_call.1']
  %s0 = inlined_call_operand.hbm [shape: f32[2,16,512], index: 0, kind: input, shape index: {}]
  %s1 = inlined_call_operand.vmem [shape: f32[16,16], index: 1, kind: input, shape index: {}]
  %s2 = inlined_call_operand.vmem [shape: f32[16,1], index: 2, kind: input, shape index: {}]
  %s3 = inlined_call_operand.<no memory space> [shape: f32[1,1], index: 3, kind: input, shape index: {}]
  %s4 = inlined_call_operand.hbm [shape: f32[2,16,512], index: 4, kind: output, shape index: {}]
  %s5 = sld [smem:[#allocation0]]
  $region53: #{tpu_custom_call.1} parent=0
    _
  %s7 = ssub.s32 1, %s5
  %s8 = scalar_select 0, %s7, %s5
  %v9 = vstv %s3
  %10 = vst [vmem:[#allocation2] sm:$0x1] %v9
  $region1: #{tpu_custom_call.1} parent=0
    #allocation3 [shape = 'u8[65536]{0}', space=vmem, size = 0x10000, scoped, tag = 'input window, operand 0']
    #allocation4 [shape = 's32[2]{0}', space=sflag, size = 0x8, scoped, tag = 'scoped memory for tpu_custom_call.1']
    #allocation5 [shape = 's32[2]{0}', space=sflag, size = 0x8, scoped, tag = 'scoped memory for tpu_custom_call.1']
    #allocation6 [shape = 'u8[65536]{0}', space=vmem, size = 0x10000, scoped, tag = 'output window, operand 0']
    %11 = vsyncpa [#allocation4], 0
    %s12 = scalar_lea.sflag [#allocation4], 1
    %13 = vsyncpa %s12, 0
    %14 = vsyncpa [#allocation5], 0
    %s15 = scalar_lea.sflag [#allocation5], 1
    %16 = vsyncpa %s15, 0
    loop: start=0, step=1, limit=4
    $region2: #{tpu_custom_call.1} parent=1 // loop_pre_header
      _
    $region3: #{tpu_custom_call.1} parent=1 // loop_header
      %s18 = sphi 0, %s22
      %p19 = scmp.ge.s32.totalorder %s18, 4
      %s25 = sphi 0, %s37
      %s26 = sphi 0, %s33
      %s27 = sphi 0, %s25
      %s28 = sphi 0, %s26
      %s29 = sphi 0, %s27
      %s30 = sphi 0, %s28
      %s42 = sphi 0, %s44
      %s45 = sphi 0, %s42
      %s46 = sphi 0, %s45
      %s62 = sphi 0, %s46
      %s66 = sphi 0, %s66
      %s68 = sphi 0, %s66
      %s69 = sphi 0, %s68
      %s83 = sphi 0, %s69
      %s87 = sphi 0, %s87
      %s89 = sphi 0, %s87
      %s90 = sphi 0, %s89
      %s104 = sphi 0, %s90
      %s108 = sphi 0, %s108
      %s110 = sphi 0, %s108
      %s111 = sphi 0, %s110
      %s125 = sphi 0, %s111
      %s133 = sphi 0, %s135
      %s136 = sphi 0, %s133
      %s137 = sphi 0, %s136
      %s153 = sphi 0, %s137
    $region4: #{tpu_custom_call.1} parent=1 // loop_header_branch
      %21 = sbr.rel (%p19) target = $region8
    $region5: #{tpu_custom_call.1} parent=1 // loop_body
      %s23 = ssub.s32 %s18, 1
      %s24 = ssub.s32 %s18, 2
      %s31 = sadd.s32 1, %s26
      %p32 = scmp.ge.s32.totalorder %s31, 1
      %s33 = scalar_select %p32, 0, %s31
      %s34 = sadd.s32 1, %s25
      %s35 = scalar_select %p32, %s34, %s25
      %p36 = scmp.ge.s32.totalorder %s35, 2
      %s37 = scalar_select %p36, 0, %s35
      %s38 = ssub.s32 %s25, %s37
      %s39 = ssub.s32 %s26, %s33
      %s40 = sor.u32 %s38, %s39
      %p41 = scmp.eq.s32.totalorder %s40, 0
      %s43 = sadd.s32 %s42, 1
      %s44 = scalar_select %p41, %s42, %s43
      %p47 = pneg %p41
      %p48 = scmp.eq.s32.totalorder %s18, 1
      %p49 = por %p47, %p48
      %p50 = scmp.ne.s32.totalorder %s42, %s45
      %p51 = scmp.eq.s32.totalorder %s18, 0
      %p52 = por %p50, %p51
      %p53 = scmp.ne.s32.totalorder %s42, %s45
      %p54 = scmp.eq.s32.totalorder %s23, 1
      %p55 = por %p53, %p54
      %p56 = scmp.ne.s32.totalorder %s45, %s46
      %p57 = scmp.eq.s32.totalorder %s23, 0
      %p58 = por %p56, %p57
      %p59 = scmp.ne.s32.totalorder %s45, %s46
      %p60 = scmp.eq.s32.totalorder %s24, 1
      %p61 = por %p59, %p60
      %p63 = scmp.ne.s32.totalorder %s46, %s62
      %p64 = scmp.eq.s32.totalorder %s24, 0
      %p65 = por %p63, %p64
      %s67 = sadd.s32 %s66, 1
      %p70 = scmp.eq.s32.totalorder %s18, 1
      %p71 = scmp.ne.s32.totalorder %s66, %s68
      %p72 = scmp.eq.s32.totalorder %s18, 0
      %p73 = por %p71, %p72
      %p74 = scmp.ne.s32.totalorder %s66, %s68
      %p75 = scmp.eq.s32.totalorder %s23, 1
      %p76 = por %p74, %p75
      %p77 = scmp.ne.s32.totalorder %s68, %s69
      %p78 = scmp.eq.s32.totalorder %s23, 0
      %p79 = por %p77, %p78
      %p80 = scmp.ne.s32.totalorder %s68, %s69
      %p81 = scmp.eq.s32.totalorder %s24, 1
      %p82 = por %p80, %p81
      %p84 = scmp.ne.s32.totalorder %s69, %s83
      %p85 = scmp.eq.s32.totalorder %s24, 0
      %p86 = por %p84, %p85
      %s88 = sadd.s32 %s87, 1
      %p91 = scmp.eq.s32.totalorder %s18, 1
      %p92 = scmp.ne.s32.totalorder %s87, %s89
      %p93 = scmp.eq.s32.totalorder %s18, 0
      %p94 = por %p92, %p93
      %p95 = scmp.ne.s32.totalorder %s87, %s89
      %p96 = scmp.eq.s32.totalorder %s23, 1
      %p97 = por %p95, %p96
      %p98 = scmp.ne.s32.totalorder %s89, %s90
      %p99 = scmp.eq.s32.totalorder %s23, 0
      %p100 = por %p98, %p99
      %p101 = scmp.ne.s32.totalorder %s89, %s90
      %p102 = scmp.eq.s32.totalorder %s24, 1
      %p103 = por %p101, %p102
      %p105 = scmp.ne.s32.totalorder %s90, %s104
      %p106 = scmp.eq.s32.totalorder %s24, 0
      %p107 = por %p105, %p106
      %s109 = sadd.s32 %s108, 1
      %p112 = scmp.eq.s32.totalorder %s18, 1
      %p113 = scmp.ne.s32.totalorder %s108, %s110
      %p114 = scmp.eq.s32.totalorder %s18, 0
      %p115 = por %p113, %p114
      %p116 = scmp.ne.s32.totalorder %s108, %s110
      %p117 = scmp.eq.s32.totalorder %s23, 1
      %p118 = por %p116, %p117
      %p119 = scmp.ne.s32.totalorder %s110, %s111
      %p120 = scmp.eq.s32.totalorder %s23, 0
      %p121 = por %p119, %p120
      %p122 = scmp.ne.s32.totalorder %s110, %s111
      %p123 = scmp.eq.s32.totalorder %s24, 1
      %p124 = por %p122, %p123
      %p126 = scmp.ne.s32.totalorder %s111, %s125
      %p127 = scmp.eq.s32.totalorder %s24, 0
      %p128 = por %p126, %p127
      %s129 = ssub.s32 %s25, %s37
      %s130 = ssub.s32 %s26, %s33
      %s131 = sor.u32 %s129, %s130
      %p132 = scmp.eq.s32.totalorder %s131, 0
      %s134 = sadd.s32 %s133, 1
      %s135 = scalar_select %p132, %s133, %s134
      %p138 = pneg %p132
      %p139 = scmp.eq.s32.totalorder %s18, 1
      %p140 = por %p138, %p139
      %p141 = scmp.ne.s32.totalorder %s133, %s136
      %p142 = scmp.eq.s32.totalorder %s18, 0
      %p143 = por %p141, %p142
      %p144 = scmp.ne.s32.totalorder %s133, %s136
      %p145 = scmp.eq.s32.totalorder %s23, 1
      %p146 = por %p144, %p145
      %p147 = scmp.ne.s32.totalorder %s136, %s137
      %p148 = scmp.eq.s32.totalorder %s23, 0
      %p149 = por %p147, %p148
      %p150 = scmp.ne.s32.totalorder %s136, %s137
      %p151 = scmp.eq.s32.totalorder %s24, 1
      %p152 = por %p150, %p151
      %p154 = scmp.ne.s32.totalorder %s137, %s153
      %p155 = scmp.eq.s32.totalorder %s24, 0
      %p156 = por %p154, %p155
      %p157 = scmp.le.s32.totalorder 1, %s18
      %p158 = scmp.lt.s32.totalorder %s18, 3
      %p159 = pnand %p157, %p158
      %p160 = pneg %p159
      // Predicated region
      $region9: #{tpu_custom_call.1} parent=5 // pred_check
        _
      $region10: #{tpu_custom_call.1} parent=5 // pred_check_branch
        %162 = sbr.rel (%p159) target = $region12
      $region11: #{tpu_custom_call.1} parent=5 // pred_region
        %s163 = ssub.s32 %s18, 1
        // Predicated region
        $region13: #{tpu_custom_call.1} parent=11 // pred_check
          %p164 = pneg %p79
        $region14: #{tpu_custom_call.1} parent=11 // pred_check_branch
          %166 = sbr.rel (%p164) target = $region16
        $region15: #{tpu_custom_call.1} parent=11 // pred_region
          _
        $region16: #{tpu_custom_call.1} parent=11 // pred_fallthru
          _
        // Predicated region
        $region17: #{tpu_custom_call.1} parent=11 // pred_check
          %p167 = pneg %p100
        $region18: #{tpu_custom_call.1} parent=11 // pred_check_branch
          %169 = sbr.rel (%p167) target = $region20
        $region19: #{tpu_custom_call.1} parent=11 // pred_region
          _
        $region20: #{tpu_custom_call.1} parent=11 // pred_fallthru
          _
        // Predicated region
        $region21: #{tpu_custom_call.1} parent=11 // pred_check
          %p170 = pneg %p121
        $region22: #{tpu_custom_call.1} parent=11 // pred_check_branch
          %172 = sbr.rel (%p170) target = $region24
        $region23: #{tpu_custom_call.1} parent=11 // pred_region
          _
        $region24: #{tpu_custom_call.1} parent=11 // pred_fallthru
          _
      $region12: #{tpu_custom_call.1} parent=5 // pred_fallthru
        _
      %p173 = scmp.lt.s32.totalorder %s18, 2
      // Predicated region
      $region25: #{tpu_custom_call.1} parent=5 // pred_check
        %p174 = pneg %p173
      $region26: #{tpu_custom_call.1} parent=5 // pred_check_branch
        %176 = sbr.rel (%p174) target = $region28
      $region27: #{tpu_custom_call.1} parent=5 // pred_region
        // Predicated region
        $region29: #{tpu_custom_call.1} parent=27 // pred_check
          %p177 = pneg %p52
        $region30: #{tpu_custom_call.1} parent=27 // pred_check_branch
          %179 = sbr.rel (%p177) target = $region32
        $region31: #{tpu_custom_call.1} parent=27 // pred_region
          %s180 = sand.u32 %s42, 1
          %s181 = scalar_lea.sflag [#allocation4], %s180
          %s182 = sand.u32 %s42, 1
          %s183 = smul.addr %s182, 64
          %s184 = scalar_lea.vmem [#allocation3], %s183
          %s185 = smul.u32 4, %s26
          %s187 = ssub.s32 1024, 1024
          %188 = vsyncadd %s181, %s187
          %s189 = smul.addr %s25, 8
          %s190 = sadd.s32 %s185, %s189
          %s191 = smul.addr %s190, 128
          %s192 = scalar_lea.hbm %s0, %s191
          %s193 = sshll.u32 %s184, 4
          %s194 = int_to_ptr.vmem [resolvable:$true] %s193
          %199 = dma.hbm_to_vmem [thread:$0]  %s192, 1024, %s194, %s181, 512, 512, 32
        $region32: #{tpu_custom_call.1} parent=27 // pred_fallthru
          _
      $region28: #{tpu_custom_call.1} parent=5 // pred_fallthru
        _
      %p200 = scmp.le.s32.totalorder 1, %s18
      %p201 = scmp.lt.s32.totalorder %s18, 3
      %p202 = pnand %p200, %p201
      %p203 = pneg %p202
      // Predicated region
      $region33: #{tpu_custom_call.1} parent=5 // pred_check
        _
      $region34: #{tpu_custom_call.1} parent=5 // pred_check_branch
        %205 = sbr.rel (%p202) target = $region36
      $region35: #{tpu_custom_call.1} parent=5 // pred_region
        %s206 = ssub.s32 %s18, 1
        %s207 = sand.u32 %s45, 1
        %s208 = scalar_lea.sflag [#allocation4], %s207
        %s209 = sand.u32 %s45, 1
        %s210 = smul.addr %s209, 64
        %s211 = scalar_lea.vmem [#allocation3], %s210
        // Predicated region
        $region37: #{tpu_custom_call.1} parent=35 // pred_check
          %p212 = pneg %p58
        $region38: #{tpu_custom_call.1} parent=35 // pred_check_branch
          %214 = sbr.rel (%p212) target = $region40
        $region39: #{tpu_custom_call.1} parent=35 // pred_region
          %215 = dma.done %s208, 1024
        $region40: #{tpu_custom_call.1} parent=35 // pred_fallthru
          _
        %s216 = sand.u32 %s45, 1
        %s217 = scalar_lea.sflag [#allocation4], %s216
        %s218 = sand.u32 %s45, 1
        %s219 = smul.addr %s218, 64
        %s220 = scalar_lea.vmem [#allocation3], %s219
        %p221 = pneg %p58
        %p222 = pneg %p55
        %p223 = pneg %p79
        %p224 = pneg %p76
        %p225 = pneg %p100
        %p226 = pneg %p97
        %p227 = pneg %p121
        %p228 = pneg %p118
        %p229 = pneg %p149
        %p230 = pneg %p146
        %s231 = sand.u32 %s136, 1
        %s232 = scalar_lea.sflag [#allocation5], %s231
        %s233 = sand.u32 %s136, 1
        %s234 = smul.addr %s233, 64
        %s235 = scalar_lea.vmem [#allocation6], %s234
        %s236 = smul.u32 4, %s28
        %s237 = smul.u32 4, %s28
        %v238 = vld [vmem:[%s211] sm:$0xff]
        %v239 = vld [vmem:[%s211 + $0x8] sm:$0xff]
        %v240 = vld [vmem:[%s211 + $0x10] sm:$0xff]
        %v241 = vld [vmem:[%s211 + $0x18] sm:$0xff]
        %v242 = vld [vmem:[%s211 + $0x20] sm:$0xff]
        %v243 = vld [vmem:[%s211 + $0x28] sm:$0xff]
        %v244 = vld [vmem:[%s211 + $0x30] sm:$0xff]
        %v245 = vld [vmem:[%s211 + $0x38] sm:$0xff]
        %v246 = vld [vmem:[%s1] sm:$0xff]
        %v247 = vld [vmem:[%s1 + $0x8] sm:$0xff]
        %v248 = vld [vmem:[%s2] sm:$0xff]
        %v249 = vld [vmem:[%s2 + $0x8] sm:$0xff]
        %251 = vset.pattern.permute.xlu0 0
        %252 = vperm.xlu0 %251, %v248
        %v253 = vpop.permute.xlu0 %252
        %256 = vset.pattern.permute.xlu0 0
        %257 = vperm.xlu0 %256, %v249
        %v258 = vpop.permute.xlu0 %257
        %vm260 = vcmask 130048
        %v262 = vsel %vm260, %v246, 0
        %v265 = vsel %vm260, %v247, 0
        %v267 = vand.u32 %v239, 4294901760
        %268 = vmatprep.subr.mxu0 %v267
        %v269 = vand.u32 %v238, 4294901760
        %270 = vmatpush1.msra.mxu0 %v269
        %v271 = vand.u32 %v243, 4294901760
        %272 = vmatprep.subr.mxu0 %v271
        %v273 = vand.u32 %v242, 4294901760
        %274 = vmatpush1.msra.mxu0 %v273
        %275 = vmatprep.subr.mxu0 0.0
        %276 = vmatpush1.msra.mxu0 0.0
        %277 = vmatprep.subr.mxu0 0.0
        %278 = vmatpush1.msra.mxu0 0.0
        %279 = vmatprep.subr.mxu0 0.0
        %280 = vmatpush1.msra.mxu0 0.0
        %281 = vmatprep.subr.mxu0 0.0
        %282 = vmatpush1.msra.mxu0 0.0
        %283 = vmatprep.subr.mxu0 0.0
        %284 = vmatpush1.msra.mxu0 0.0
        %285 = vmatprep.subr.mxu0 0.0
        %286 = vmatpush1.msra.mxu0 0.0
        %287 = vmatprep.subr.mxu0 0.0
        %288 = vmatpush1.msra.mxu0 0.0
        %289 = vmatprep.subr.mxu0 0.0
        %290 = vmatpush1.msra.mxu0 0.0
        %291 = vmatprep.subr.mxu0 0.0
        %292 = vmatpush1.msra.mxu0 0.0
        %293 = vmatprep.subr.mxu0 0.0
        %294 = vmatpush1.msra.mxu0 0.0
        %295 = vmatprep.subr.mxu0 0.0
        %296 = vmatpush1.msra.mxu0 0.0
        %297 = vmatprep.subr.mxu0 0.0
        %298 = vmatpush1.msra.mxu0 0.0
        %299 = vmatprep.subr.mxu0 0.0
        %300 = vmatpush1.msra.mxu0 0.0
        %301 = vmatprep.subr.mxu0 0.0
        %302 = vmatpush1.msra.mxu0 0.0
        %303 = vmatprep.subr.mxu0 0.0
        %304 = vmatpush1.msra.mxu0 0.0
        %305 = vmatprep.subr.mxu0 0.0
        %306 = vmatpush1.msra.mxu0 0.0
        %307 = vmatprep.subr.mxu0 0.0
        %308 = vmatpush1.msra.mxu0 0.0
        %309 = vmatprep.subr.mxu0 0.0
        %310 = vmatpush1.msra.mxu0 0.0
        %311 = vmatprep.subr.mxu0 0.0
        %312 = vmatpush1.msra.mxu0 0.0
        %313 = vmatprep.subr.mxu0 0.0
        %314 = vmatpush1.msra.mxu0 0.0
        %315 = vmatprep.subr.mxu0 0.0
        %316 = vmatpush1.msra.mxu0 0.0
        %317 = vmatprep.subr.mxu0 0.0
        %318 = vmatpush1.msra.mxu0 0.0
        %319 = vmatprep.subr.mxu0 0.0
        %320 = vmatpush1.msra.mxu0 0.0
        %321 = vmatprep.subr.mxu0 0.0
        %322 = vmatpush1.msra.mxu0 0.0
        %323 = vmatprep.subr.mxu0 0.0
        %324 = vmatpush1.msra.mxu0 0.0
        %325 = vmatprep.subr.mxu0 0.0
        %326 = vmatpush1.msra.mxu0 0.0
        %327 = vmatprep.subr.mxu0 0.0
        %328 = vmatpush1.msra.mxu0 0.0
        %329 = vmatprep.subr.mxu0 0.0
        %330 = vmatpush1.msra.mxu0 0.0
        %331 = vmatprep.subr.mxu0 0.0
        %332 = vmatpush1.msra.mxu0 0.0
        %333 = vmatprep.subr.mxu0 0.0
        %334 = vmatpush1.msra.mxu0 0.0
        %335 = vmatprep.mubr.f32.mxu0 0.0
        %v336 = vand.u32 %v262, 4294901760
        %v337 = vsub.f32 %v262, %v336
        %v338 = vand.u32 %v337, 4294901760
        %v339 = vsub.f32 %v337, %v338
        %v340 = vand.u32 %v339, 4294901760
        %341 = vmatmul.mubr.f32.gmra.mrb[0].mxu0 %v340
        %v342 = vpop.f32.mrb[0].mxu0
        %v343 = vadd.f32 %v253, %v342
        %v344 = vpop.f32.mrb[0].mxu0
        %v345 = vadd.f32 %v253, %v344
        %346 = vmatprep.mubr.f32.mxu0 0.0
        %v347 = vand.u32 %v265, 4294901760
        %v348 = vsub.f32 %v265, %v347
        %v349 = vand.u32 %v348, 4294901760
        %v350 = vsub.f32 %v348, %v349
        %v351 = vand.u32 %v350, 4294901760
        %352 = vmatmul.mubr.f32.gmra.mrb[0].mxu0 %v351
        %v353 = vpop.f32.mrb[0].mxu0
        %v354 = vadd.f32 %v258, %v353
        %v355 = vpop.f32.mrb[0].mxu0
        %v356 = vadd.f32 %v258, %v355
        %357 = vdwg.mxu0
        %v358 = vand.u32 %v239, 4294901760
        %v359 = vsub.f32 %v239, %v358
        %v360 = vand.u32 %v359, 4294901760
        %v361 = vsub.f32 %v359, %v360
        %v362 = vand.u32 %v361, 4294901760
        %363 = vmatprep.subr.mxu0 %v362
        %v364 = vand.u32 %v238, 4294901760
        %v365 = vsub.f32 %v238, %v364
        %v366 = vand.u32 %v365, 4294901760
        %v367 = vsub.f32 %v365, %v366
        %v368 = vand.u32 %v367, 4294901760
        %369 = vmatpush1.msra.mxu0 %v368
        %v370 = vand.u32 %v243, 4294901760
        %v371 = vsub.f32 %v243, %v370
        %v372 = vand.u32 %v371, 4294901760
        %v373 = vsub.f32 %v371, %v372
        %v374 = vand.u32 %v373, 4294901760
        %375 = vmatprep.subr.mxu0 %v374
        %v376 = vand.u32 %v242, 4294901760
        %v377 = vsub.f32 %v242, %v376
        %v378 = vand.u32 %v377, 4294901760
        %v379 = vsub.f32 %v377, %v378
        %v380 = vand.u32 %v379, 4294901760
        %381 = vmatpush1.msra.mxu0 %v380
        %382 = vmatprep.subr.mxu0 0.0
        %383 = vmatpush1.msra.mxu0 0.0
        %384 = vmatprep.subr.mxu0 0.0
        %385 = vmatpush1.msra.mxu0 0.0
        %386 = vmatprep.subr.mxu0 0.0
        %387 = vmatpush1.msra.mxu0 0.0
        %388 = vmatprep.subr.mxu0 0.0
        %389 = vmatpush1.msra.mxu0 0.0
        %390 = vmatprep.subr.mxu0 0.0
        %391 = vmatpush1.msra.mxu0 0.0
        %392 = vmatprep.subr.mxu0 0.0
        %393 = vmatpush1.msra.mxu0 0.0
        %394 = vmatprep.subr.mxu0 0.0
        %395 = vmatpush1.msra.mxu0 0.0
        %396 = vmatprep.subr.mxu0 0.0
        %397 = vmatpush1.msra.mxu0 0.0
        %398 = vmatprep.subr.mxu0 0.0
        %399 = vmatpush1.msra.mxu0 0.0
        %400 = vmatprep.subr.mxu0 0.0
        %401 = vmatpush1.msra.mxu0 0.0
        %402 = vmatprep.subr.mxu0 0.0
        %403 = vmatpush1.msra.mxu0 0.0
        %404 = vmatprep.subr.mxu0 0.0
        %405 = vmatpush1.msra.mxu0 0.0
        %406 = vmatprep.subr.mxu0 0.0
        %407 = vmatpush1.msra.mxu0 0.0
        %408 = vmatprep.subr.mxu0 0.0
        %409 = vmatpush1.msra.mxu0 0.0
        %410 = vmatprep.subr.mxu0 0.0
        %411 = vmatpush1.msra.mxu0 0.0
        %412 = vmatprep.subr.mxu0 0.0
        %413 = vmatpush1.msra.mxu0 0.0
        %414 = vmatprep.subr.mxu0 0.0
        %415 = vmatpush1.msra.mxu0 0.0
        %416 = vmatprep.subr.mxu0 0.0
        %417 = vmatpush1.msra.mxu0 0.0
        %418 = vmatprep.subr.mxu0 0.0
        %419 = vmatpush1.msra.mxu0 0.0
        %420 = vmatprep.subr.mxu0 0.0
        %421 = vmatpush1.msra.mxu0 0.0
        %422 = vmatprep.subr.mxu0 0.0
        %423 = vmatpush1.msra.mxu0 0.0
        %424 = vmatprep.subr.mxu0 0.0
        %425 = vmatpush1.msra.mxu0 0.0
        %426 = vmatprep.subr.mxu0 0.0
        %427 = vmatpush1.msra.mxu0 0.0
        %428 = vmatprep.subr.mxu0 0.0
        %429 = vmatpush1.msra.mxu0 0.0
        %430 = vmatprep.subr.mxu0 0.0
        %431 = vmatpush1.msra.mxu0 0.0
        %432 = vmatprep.subr.mxu0 0.0
        %433 = vmatpush1.msra.mxu0 0.0
        %434 = vmatprep.subr.mxu0 0.0
        %435 = vmatpush1.msra.mxu0 0.0
        %436 = vmatprep.subr.mxu0 0.0
        %437 = vmatpush1.msra.mxu0 0.0
        %438 = vmatprep.subr.mxu0 0.0
        %439 = vmatpush1.msra.mxu0 0.0
        %440 = vmatprep.subr.mxu0 0.0
        %441 = vmatpush1.msra.mxu0 0.0
        %442 = vmatprep.mubr.f32.mxu0 0.0
        %v443 = vand.u32 %v262, 4294901760
        %444 = vmatmul.mubr.f32.gmra.mrb[0].mxu0 %v443
        %v445 = vpop.f32.mrb[0].mxu0
        %v446 = vadd.f32 %v343, %v445
        %v447 = vpop.f32.mrb[0].mxu0
        %v448 = vadd.f32 %v345, %v447
        %449 = vmatprep.mubr.f32.mxu0 0.0
        %v450 = vand.u32 %v265, 4294901760
        %451 = vmatmul.mubr.f32.gmra.mrb[0].mxu0 %v450
        %v452 = vpop.f32.mrb[0].mxu0
        %v453 = vadd.f32 %v354, %v452
        %v454 = vpop.f32.mrb[0].mxu0
        %v455 = vadd.f32 %v356, %v454
        %456 = vdwg.mxu0
        %v457 = vand.u32 %v239, 4294901760
        %v458 = vsub.f32 %v239, %v457
        %459 = vmatprep.subr.mxu0 %v458
        %v460 = vand.u32 %v238, 4294901760
        %v461 = vsub.f32 %v238, %v460
        %462 = vmatpush1.msra.mxu0 %v461
        %v463 = vand.u32 %v243, 4294901760
        %v464 = vsub.f32 %v243, %v463
        %465 = vmatprep.subr.mxu0 %v464
        %v466 = vand.u32 %v242, 4294901760
        %v467 = vsub.f32 %v242, %v466
        %468 = vmatpush1.msra.mxu0 %v467
        %469 = vmatprep.subr.mxu0 0.0
        %470 = vmatpush1.msra.mxu0 0.0
        %471 = vmatprep.subr.mxu0 0.0
        %472 = vmatpush1.msra.mxu0 0.0
        %473 = vmatprep.subr.mxu0 0.0
        %474 = vmatpush1.msra.mxu0 0.0
        %475 = vmatprep.subr.mxu0 0.0
        %476 = vmatpush1.msra.mxu0 0.0
        %477 = vmatprep.subr.mxu0 0.0
        %478 = vmatpush1.msra.mxu0 0.0
        %479 = vmatprep.subr.mxu0 0.0
        %480 = vmatpush1.msra.mxu0 0.0
        %481 = vmatprep.subr.mxu0 0.0
        %482 = vmatpush1.msra.mxu0 0.0
        %483 = vmatprep.subr.mxu0 0.0
        %484 = vmatpush1.msra.mxu0 0.0
        %485 = vmatprep.subr.mxu0 0.0
        %486 = vmatpush1.msra.mxu0 0.0
        %487 = vmatprep.subr.mxu0 0.0
        %488 = vmatpush1.msra.mxu0 0.0
        %489 = vmatprep.subr.mxu0 0.0
        %490 = vmatpush1.msra.mxu0 0.0
        %491 = vmatprep.subr.mxu0 0.0
        %492 = vmatpush1.msra.mxu0 0.0
        %493 = vmatprep.subr.mxu0 0.0
        %494 = vmatpush1.msra.mxu0 0.0
        %495 = vmatprep.subr.mxu0 0.0
        %496 = vmatpush1.msra.mxu0 0.0
        %497 = vmatprep.subr.mxu0 0.0
        %498 = vmatpush1.msra.mxu0 0.0
        %499 = vmatprep.subr.mxu0 0.0
        %500 = vmatpush1.msra.mxu0 0.0
        %501 = vmatprep.subr.mxu0 0.0
        %502 = vmatpush1.msra.mxu0 0.0
        %503 = vmatprep.subr.mxu0 0.0
        %504 = vmatpush1.msra.mxu0 0.0
        %505 = vmatprep.subr.mxu0 0.0
        %506 = vmatpush1.msra.mxu0 0.0
        %507 = vmatprep.subr.mxu0 0.0
        %508 = vmatpush1.msra.mxu0 0.0
        %509 = vmatprep.subr.mxu0 0.0
        %510 = vmatpush1.msra.mxu0 0.0
        %511 = vmatprep.subr.mxu0 0.0
        %512 = vmatpush1.msra.mxu0 0.0
        %513 = vmatprep.subr.mxu0 0.0
        %514 = vmatpush1.msra.mxu0 0.0
        %515 = vmatprep.subr.mxu0 0.0
        %516 = vmatpush1.msra.mxu0 0.0
        %517 = vmatprep.subr.mxu0 0.0
        %518 = vmatpush1.msra.mxu0 0.0
        %519 = vmatprep.subr.mxu0 0.0
        %520 = vmatpush1.msra.mxu0 0.0
        %521 = vmatprep.subr.mxu0 0.0
        %522 = vmatpush1.msra.mxu0 0.0
        %523 = vmatprep.subr.mxu0 0.0
        %524 = vmatpush1.msra.mxu0 0.0
        %525 = vmatprep.subr.mxu0 0.0
        %526 = vmatpush1.msra.mxu0 0.0
        %527 = vmatprep.subr.mxu0 0.0
        %528 = vmatpush1.msra.mxu0 0.0
        %529 = vmatprep.mubr.f32.mxu0 0.0
        %v530 = vand.u32 %v262, 4294901760
        %v531 = vsub.f32 %v262, %v530
        %532 = vmatmul.mubr.f32.gmra.mrb[0].mxu0 %v531
        %v533 = vpop.f32.mrb[0].mxu0
        %v534 = vadd.f32 %v446, %v533
        %v535 = vpop.f32.mrb[0].mxu0
        %v536 = vadd.f32 %v448, %v535
        %537 = vmatprep.mubr.f32.mxu0 0.0
        %v538 = vand.u32 %v265, 4294901760
        %v539 = vsub.f32 %v265, %v538
        %540 = vmatmul.mubr.f32.gmra.mrb[0].mxu0 %v539
        %v541 = vpop.f32.mrb[0].mxu0
        %v542 = vadd.f32 %v453, %v541
        %v543 = vpop.f32.mrb[0].mxu0
        %v544 = vadd.f32 %v455, %v543
        %545 = vdwg.mxu0
        %v546 = vand.u32 %v239, 4294901760
        %547 = vmatprep.subr.mxu0 %v546
        %v548 = vand.u32 %v238, 4294901760
        %549 = vmatpush1.msra.mxu0 %v548
        %v550 = vand.u32 %v243, 4294901760
        %551 = vmatprep.subr.mxu0 %v550
        %v552 = vand.u32 %v242, 4294901760
        %553 = vmatpush1.msra.mxu0 %v552
        %554 = vmatprep.subr.mxu0 0.0
        %555 = vmatpush1.msra.mxu0 0.0
        %556 = vmatprep.subr.mxu0 0.0
        %557 = vmatpush1.msra.mxu0 0.0
        %558 = vmatprep.subr.mxu0 0.0
        %559 = vmatpush1.msra.mxu0 0.0
        %560 = vmatprep.subr.mxu0 0.0
        %561 = vmatpush1.msra.mxu0 0.0
        %562 = vmatprep.subr.mxu0 0.0
        %563 = vmatpush1.msra.mxu0 0.0
        %564 = vmatprep.subr.mxu0 0.0
        %565 = vmatpush1.msra.mxu0 0.0
        %566 = vmatprep.subr.mxu0 0.0
        %567 = vmatpush1.msra.mxu0 0.0
        %568 = vmatprep.subr.mxu0 0.0
        %569 = vmatpush1.msra.mxu0 0.0
        %570 = vmatprep.subr.mxu0 0.0
        %571 = vmatpush1.msra.mxu0 0.0
        %572 = vmatprep.subr.mxu0 0.0
        %573 = vmatpush1.msra.mxu0 0.0
        %574 = vmatprep.subr.mxu0 0.0
        %575 = vmatpush1.msra.mxu0 0.0
        %576 = vmatprep.subr.mxu0 0.0
        %577 = vmatpush1.msra.mxu0 0.0
        %578 = vmatprep.subr.mxu0 0.0
        %579 = vmatpush1.msra.mxu0 0.0
        %580 = vmatprep.subr.mxu0 0.0
        %581 = vmatpush1.msra.mxu0 0.0
        %582 = vmatprep.subr.mxu0 0.0
        %583 = vmatpush1.msra.mxu0 0.0
        %584 = vmatprep.subr.mxu0 0.0
        %585 = vmatpush1.msra.mxu0 0.0
        %586 = vmatprep.subr.mxu0 0.0
        %587 = vmatpush1.msra.mxu0 0.0
        %588 = vmatprep.subr.mxu0 0.0
        %589 = vmatpush1.msra.mxu0 0.0
        %590 = vmatprep.subr.mxu0 0.0
        %591 = vmatpush1.msra.mxu0 0.0
        %592 = vmatprep.subr.mxu0 0.0
        %593 = vmatpush1.msra.mxu0 0.0
        %594 = vmatprep.subr.mxu0 0.0
        %595 = vmatpush1.msra.mxu0 0.0
        %596 = vmatprep.subr.mxu0 0.0
        %597 = vmatpush1.msra.mxu0 0.0
        %598 = vmatprep.subr.mxu0 0.0
        %599 = vmatpush1.msra.mxu0 0.0
        %600 = vmatprep.subr.mxu0 0.0
        %601 = vmatpush1.msra.mxu0 0.0
        %602 = vmatprep.subr.mxu0 0.0
        %603 = vmatpush1.msra.mxu0 0.0
        %604 = vmatprep.subr.mxu0 0.0
        %605 = vmatpush1.msra.mxu0 0.0
        %606 = vmatprep.subr.mxu0 0.0
        %607 = vmatpush1.msra.mxu0 0.0
        %608 = vmatprep.subr.mxu0 0.0
        %609 = vmatpush1.msra.mxu0 0.0
        %610 = vmatprep.subr.mxu0 0.0
        %611 = vmatpush1.msra.mxu0 0.0
        %612 = vmatprep.subr.mxu0 0.0
        %613 = vmatpush1.msra.mxu0 0.0
        %614 = vmatprep.mubr.f32.mxu0 0.0
        %v615 = vand.u32 %v262, 4294901760
        %v616 = vsub.f32 %v262, %v615
        %v617 = vand.u32 %v616, 4294901760
        %618 = vmatmul.mubr.f32.gmra.mrb[0].mxu0 %v617
        %v619 = vpop.f32.mrb[0].mxu0
        %v620 = vadd.f32 %v534, %v619
        %v621 = vpop.f32.mrb[0].mxu0
        %v622 = vadd.f32 %v536, %v621
        %623 = vmatprep.mubr.f32.mxu0 0.0
        %v624 = vand.u32 %v265, 4294901760
        %v625 = vsub.f32 %v265, %v624
        %v626 = vand.u32 %v625, 4294901760
        %627 = vmatmul.mubr.f32.gmra.mrb[0].mxu0 %v626
        %v628 = vpop.f32.mrb[0].mxu0
        %v629 = vadd.f32 %v542, %v628
        %v630 = vpop.f32.mrb[0].mxu0
        %v631 = vadd.f32 %v544, %v630
        %632 = vdwg.mxu0
        %v633 = vand.u32 %v239, 4294901760
        %v634 = vsub.f32 %v239, %v633
        %v635 = vand.u32 %v634, 4294901760
        %636 = vmatprep.subr.mxu0 %v635
        %v637 = vand.u32 %v238, 4294901760
        %v638 = vsub.f32 %v238, %v637
        %v639 = vand.u32 %v638, 4294901760
        %640 = vmatpush1.msra.mxu0 %v639
        %v641 = vand.u32 %v243, 4294901760
        %v642 = vsub.f32 %v243, %v641
        %v643 = vand.u32 %v642, 4294901760
        %644 = vmatprep.subr.mxu0 %v643
        %v645 = vand.u32 %v242, 4294901760
        %v646 = vsub.f32 %v242, %v645
        %v647 = vand.u32 %v646, 4294901760
        %648 = vmatpush1.msra.mxu0 %v647
        %649 = vmatprep.subr.mxu0 0.0
        %650 = vmatpush1.msra.mxu0 0.0
        %651 = vmatprep.subr.mxu0 0.0
        %652 = vmatpush1.msra.mxu0 0.0
        %653 = vmatprep.subr.mxu0 0.0
        %654 = vmatpush1.msra.mxu0 0.0
        %655 = vmatprep.subr.mxu0 0.0
        %656 = vmatpush1.msra.mxu0 0.0
        %657 = vmatprep.subr.mxu0 0.0
        %658 = vmatpush1.msra.mxu0 0.0
        %659 = vmatprep.subr.mxu0 0.0
        %660 = vmatpush1.msra.mxu0 0.0
        %661 = vmatprep.subr.mxu0 0.0
        %662 = vmatpush1.msra.mxu0 0.0
        %663 = vmatprep.subr.mxu0 0.0
        %664 = vmatpush1.msra.mxu0 0.0
        %665 = vmatprep.subr.mxu0 0.0
        %666 = vmatpush1.msra.mxu0 0.0
        %667 = vmatprep.subr.mxu0 0.0
        %668 = vmatpush1.msra.mxu0 0.0
        %669 = vmatprep.subr.mxu0 0.0
        %670 = vmatpush1.msra.mxu0 0.0
        %671 = vmatprep.subr.mxu0 0.0
        %672 = vmatpush1.msra.mxu0 0.0
        %673 = vmatprep.subr.mxu0 0.0
        %674 = vmatpush1.msra.mxu0 0.0
        %675 = vmatprep.subr.mxu0 0.0
        %676 = vmatpush1.msra.mxu0 0.0
        %677 = vmatprep.subr.mxu0 0.0
        %678 = vmatpush1.msra.mxu0 0.0
        %679 = vmatprep.subr.mxu0 0.0
        %680 = vmatpush1.msra.mxu0 0.0
        %681 = vmatprep.subr.mxu0 0.0
        %682 = vmatpush1.msra.mxu0 0.0
        %683 = vmatprep.subr.mxu0 0.0
        %684 = vmatpush1.msra.mxu0 0.0
        %685 = vmatprep.subr.mxu0 0.0
        %686 = vmatpush1.msra.mxu0 0.0
        %687 = vmatprep.subr.mxu0 0.0
        %688 = vmatpush1.msra.mxu0 0.0
        %689 = vmatprep.subr.mxu0 0.0
        %690 = vmatpush1.msra.mxu0 0.0
        %691 = vmatprep.subr.mxu0 0.0
        %692 = vmatpush1.msra.mxu0 0.0
        %693 = vmatprep.subr.mxu0 0.0
        %694 = vmatpush1.msra.mxu0 0.0
        %695 = vmatprep.subr.mxu0 0.0
        %696 = vmatpush1.msra.mxu0 0.0
        %697 = vmatprep.subr.mxu0 0.0
        %698 = vmatpush1.msra.mxu0 0.0
        %699 = vmatprep.subr.mxu0 0.0
        %700 = vmatpush1.msra.mxu0 0.0
        %701 = vmatprep.subr.mxu0 0.0
        %702 = vmatpush1.msra.mxu0 0.0
        %703 = vmatprep.subr.mxu0 0.0
        %704 = vmatpush1.msra.mxu0 0.0
        %705 = vmatprep.subr.mxu0 0.0
        %706 = vmatpush1.msra.mxu0 0.0
        %707 = vmatprep.subr.mxu0 0.0
        %708 = vmatpush1.msra.mxu0 0.0
        %709 = vmatprep.mubr.f32.mxu0 0.0
        %v710 = vand.u32 %v262, 4294901760
        %711 = vmatmul.mubr.f32.gmra.mrb[0].mxu0 %v710
        %v712 = vpop.f32.mrb[0].mxu0
        %v713 = vadd.f32 %v620, %v712
        %v714 = vpop.f32.mrb[0].mxu0
        %v715 = vadd.f32 %v622, %v714
        %716 = vmatprep.mubr.f32.mxu0 0.0
        %v717 = vand.u32 %v265, 4294901760
        %718 = vmatmul.mubr.f32.gmra.mrb[0].mxu0 %v717
        %v719 = vpop.f32.mrb[0].mxu0
        %v720 = vadd.f32 %v629, %v719
        %v721 = vpop.f32.mrb[0].mxu0
        %v722 = vadd.f32 %v631, %v721
        %723 = vdwg.mxu0
        %v724 = vand.u32 %v239, 4294901760
        %725 = vmatprep.subr.mxu0 %v724
        %v726 = vand.u32 %v238, 4294901760
        %727 = vmatpush1.msra.mxu0 %v726
        %v728 = vand.u32 %v243, 4294901760
        %729 = vmatprep.subr.mxu0 %v728
        %v730 = vand.u32 %v242, 4294901760
        %731 = vmatpush1.msra.mxu0 %v730
        %732 = vmatprep.subr.mxu0 0.0
        %733 = vmatpush1.msra.mxu0 0.0
        %734 = vmatprep.subr.mxu0 0.0
        %735 = vmatpush1.msra.mxu0 0.0
        %736 = vmatprep.subr.mxu0 0.0
        %737 = vmatpush1.msra.mxu0 0.0
        %738 = vmatprep.subr.mxu0 0.0
        %739 = vmatpush1.msra.mxu0 0.0
        %740 = vmatprep.subr.mxu0 0.0
        %741 = vmatpush1.msra.mxu0 0.0
        %742 = vmatprep.subr.mxu0 0.0
        %743 = vmatpush1.msra.mxu0 0.0
        %744 = vmatprep.subr.mxu0 0.0
        %745 = vmatpush1.msra.mxu0 0.0
        %746 = vmatprep.subr.mxu0 0.0
        %747 = vmatpush1.msra.mxu0 0.0
        %748 = vmatprep.subr.mxu0 0.0
        %749 = vmatpush1.msra.mxu0 0.0
        %750 = vmatprep.subr.mxu0 0.0
        %751 = vmatpush1.msra.mxu0 0.0
        %752 = vmatprep.subr.mxu0 0.0
        %753 = vmatpush1.msra.mxu0 0.0
        %754 = vmatprep.subr.mxu0 0.0
        %755 = vmatpush1.msra.mxu0 0.0
        %756 = vmatprep.subr.mxu0 0.0
        %757 = vmatpush1.msra.mxu0 0.0
        %758 = vmatprep.subr.mxu0 0.0
        %759 = vmatpush1.msra.mxu0 0.0
        %760 = vmatprep.subr.mxu0 0.0
        %761 = vmatpush1.msra.mxu0 0.0
        %762 = vmatprep.subr.mxu0 0.0
        %763 = vmatpush1.msra.mxu0 0.0
        %764 = vmatprep.subr.mxu0 0.0
        %765 = vmatpush1.msra.mxu0 0.0
        %766 = vmatprep.subr.mxu0 0.0
        %767 = vmatpush1.msra.mxu0 0.0
        %768 = vmatprep.subr.mxu0 0.0
        %769 = vmatpush1.msra.mxu0 0.0
        %770 = vmatprep.subr.mxu0 0.0
        %771 = vmatpush1.msra.mxu0 0.0
        %772 = vmatprep.subr.mxu0 0.0
        %773 = vmatpush1.msra.mxu0 0.0
        %774 = vmatprep.subr.mxu0 0.0
        %775 = vmatpush1.msra.mxu0 0.0
        %776 = vmatprep.subr.mxu0 0.0
        %777 = vmatpush1.msra.mxu0 0.0
        %778 = vmatprep.subr.mxu0 0.0
        %779 = vmatpush1.msra.mxu0 0.0
        %780 = vmatprep.subr.mxu0 0.0
        %781 = vmatpush1.msra.mxu0 0.0
        %782 = vmatprep.subr.mxu0 0.0
        %783 = vmatpush1.msra.mxu0 0.0
        %784 = vmatprep.subr.mxu0 0.0
        %785 = vmatpush1.msra.mxu0 0.0
        %786 = vmatprep.subr.mxu0 0.0
        %787 = vmatpush1.msra.mxu0 0.0
        %788 = vmatprep.subr.mxu0 0.0
        %789 = vmatpush1.msra.mxu0 0.0
        %790 = vmatprep.subr.mxu0 0.0
        %791 = vmatpush1.msra.mxu0 0.0
        %792 = vmatprep.mubr.f32.mxu0 0.0
        %v793 = vand.u32 %v262, 4294901760
        %794 = vmatmul.mubr.f32.gmra.mrb[0].mxu0 %v793
        %v795 = vpop.f32.mrb[0].mxu0
        %v796 = vadd.f32 %v713, %v795
        %v797 = vpop.f32.mrb[0].mxu0
        %v798 = vadd.f32 %v715, %v797
        %799 = vmatprep.mubr.f32.mxu0 0.0
        %v800 = vand.u32 %v265, 4294901760
        %801 = vmatmul.mubr.f32.gmra.mrb[0].mxu0 %v800
        %v802 = vpop.f32.mrb[0].mxu0
        %v803 = vadd.f32 %v720, %v802
        %v804 = vpop.f32.mrb[0].mxu0
        %v805 = vadd.f32 %v722, %v804
        %806 = vdwg.mxu0
        %v807 = vand.u32 %v241, 4294901760
        %808 = vmatprep.subr.mxu0 %v807
        %v809 = vand.u32 %v240, 4294901760
        %810 = vmatpush1.msra.mxu0 %v809
        %v811 = vand.u32 %v245, 4294901760
        %812 = vmatprep.subr.mxu0 %v811
        %v813 = vand.u32 %v244, 4294901760
        %814 = vmatpush1.msra.mxu0 %v813
        %815 = vmatprep.subr.mxu0 0.0
        %816 = vmatpush1.msra.mxu0 0.0
        %817 = vmatprep.subr.mxu0 0.0
        %818 = vmatpush1.msra.mxu0 0.0
        %819 = vmatprep.subr.mxu0 0.0
        %820 = vmatpush1.msra.mxu0 0.0
        %821 = vmatprep.subr.mxu0 0.0
        %822 = vmatpush1.msra.mxu0 0.0
        %823 = vmatprep.subr.mxu0 0.0
        %824 = vmatpush1.msra.mxu0 0.0
        %825 = vmatprep.subr.mxu0 0.0
        %826 = vmatpush1.msra.mxu0 0.0
        %827 = vmatprep.subr.mxu0 0.0
        %828 = vmatpush1.msra.mxu0 0.0
        %829 = vmatprep.subr.mxu0 0.0
        %830 = vmatpush1.msra.mxu0 0.0
        %831 = vmatprep.subr.mxu0 0.0
        %832 = vmatpush1.msra.mxu0 0.0
        %833 = vmatprep.subr.mxu0 0.0
        %834 = vmatpush1.msra.mxu0 0.0
        %835 = vmatprep.subr.mxu0 0.0
        %836 = vmatpush1.msra.mxu0 0.0
        %837 = vmatprep.subr.mxu0 0.0
        %838 = vmatpush1.msra.mxu0 0.0
        %839 = vmatprep.subr.mxu0 0.0
        %840 = vmatpush1.msra.mxu0 0.0
        %841 = vmatprep.subr.mxu0 0.0
        %842 = vmatpush1.msra.mxu0 0.0
        %843 = vmatprep.subr.mxu0 0.0
        %844 = vmatpush1.msra.mxu0 0.0
        %845 = vmatprep.subr.mxu0 0.0
        %846 = vmatpush1.msra.mxu0 0.0
        %847 = vmatprep.subr.mxu0 0.0
        %848 = vmatpush1.msra.mxu0 0.0
        %849 = vmatprep.subr.mxu0 0.0
        %850 = vmatpush1.msra.mxu0 0.0
        %851 = vmatprep.subr.mxu0 0.0
        %852 = vmatpush1.msra.mxu0 0.0
        %853 = vmatprep.subr.mxu0 0.0
        %854 = vmatpush1.msra.mxu0 0.0
        %855 = vmatprep.subr.mxu0 0.0
        %856 = vmatpush1.msra.mxu0 0.0
        %857 = vmatprep.subr.mxu0 0.0
        %858 = vmatpush1.msra.mxu0 0.0
        %859 = vmatprep.subr.mxu0 0.0
        %860 = vmatpush1.msra.mxu0 0.0
        %861 = vmatprep.subr.mxu0 0.0
        %862 = vmatpush1.msra.mxu0 0.0
        %863 = vmatprep.subr.mxu0 0.0
        %864 = vmatpush1.msra.mxu0 0.0
        %865 = vmatprep.subr.mxu0 0.0
        %866 = vmatpush1.msra.mxu0 0.0
        %867 = vmatprep.subr.mxu0 0.0
        %868 = vmatpush1.msra.mxu0 0.0
        %869 = vmatprep.subr.mxu0 0.0
        %870 = vmatpush1.msra.mxu0 0.0
        %871 = vmatprep.subr.mxu0 0.0
        %872 = vmatpush1.msra.mxu0 0.0
        %873 = vmatprep.subr.mxu0 0.0
        %874 = vmatpush1.msra.mxu0 0.0
        %875 = vmatprep.mubr.f32.mxu0 0.0
        %v876 = vand.u32 %v262, 4294901760
        %v877 = vsub.f32 %v262, %v876
        %v878 = vand.u32 %v877, 4294901760
        %v879 = vsub.f32 %v877, %v878
        %v880 = vand.u32 %v879, 4294901760
        %881 = vmatmul.mubr.f32.gmra.mrb[0].mxu0 %v880
        %v882 = vpop.f32.mrb[0].mxu0
        %v883 = vadd.f32 %v253, %v882
        %v884 = vpop.f32.mrb[0].mxu0
        %v885 = vadd.f32 %v253, %v884
        %886 = vmatprep.mubr.f32.mxu0 0.0
        %v887 = vand.u32 %v265, 4294901760
        %v888 = vsub.f32 %v265, %v887
        %v889 = vand.u32 %v888, 4294901760
        %v890 = vsub.f32 %v888, %v889
        %v891 = vand.u32 %v890, 4294901760
        %892 = vmatmul.mubr.f32.gmra.mrb[0].mxu0 %v891
        %v893 = vpop.f32.mrb[0].mxu0
        %v894 = vadd.f32 %v258, %v893
        %v895 = vpop.f32.mrb[0].mxu0
        %v896 = vadd.f32 %v258, %v895
        %897 = vdwg.mxu0
        %v898 = vand.u32 %v241, 4294901760
        %v899 = vsub.f32 %v241, %v898
        %v900 = vand.u32 %v899, 4294901760
        %v901 = vsub.f32 %v899, %v900
        %v902 = vand.u32 %v901, 4294901760
        %903 = vmatprep.subr.mxu0 %v902
        %v904 = vand.u32 %v240, 4294901760
        %v905 = vsub.f32 %v240, %v904
        %v906 = vand.u32 %v905, 4294901760
        %v907 = vsub.f32 %v905, %v906
        %v908 = vand.u32 %v907, 4294901760
        %909 = vmatpush1.msra.mxu0 %v908
        %v910 = vand.u32 %v245, 4294901760
        %v911 = vsub.f32 %v245, %v910
        %v912 = vand.u32 %v911, 4294901760
        %v913 = vsub.f32 %v911, %v912
        %v914 = vand.u32 %v913, 4294901760
        %915 = vmatprep.subr.mxu0 %v914
        %v916 = vand.u32 %v244, 4294901760
        %v917 = vsub.f32 %v244, %v916
        %v918 = vand.u32 %v917, 4294901760
        %v919 = vsub.f32 %v917, %v918
        %v920 = vand.u32 %v919, 4294901760
        %921 = vmatpush1.msra.mxu0 %v920
        %922 = vmatprep.subr.mxu0 0.0
        %923 = vmatpush1.msra.mxu0 0.0
        %924 = vmatprep.subr.mxu0 0.0
        %925 = vmatpush1.msra.mxu0 0.0
        %926 = vmatprep.subr.mxu0 0.0
        %927 = vmatpush1.msra.mxu0 0.0
        %928 = vmatprep.subr.mxu0 0.0
        %929 = vmatpush1.msra.mxu0 0.0
        %930 = vmatprep.subr.mxu0 0.0
        %931 = vmatpush1.msra.mxu0 0.0
        %932 = vmatprep.subr.mxu0 0.0
        %933 = vmatpush1.msra.mxu0 0.0
        %934 = vmatprep.subr.mxu0 0.0
        %935 = vmatpush1.msra.mxu0 0.0
        %936 = vmatprep.subr.mxu0 0.0
        %937 = vmatpush1.msra.mxu0 0.0
        %938 = vmatprep.subr.mxu0 0.0
        %939 = vmatpush1.msra.mxu0 0.0
        %940 = vmatprep.subr.mxu0 0.0
        %941 = vmatpush1.msra.mxu0 0.0
        %942 = vmatprep.subr.mxu0 0.0
        %943 = vmatpush1.msra.mxu0 0.0
        %944 = vmatprep.subr.mxu0 0.0
        %945 = vmatpush1.msra.mxu0 0.0
        %946 = vmatprep.subr.mxu0 0.0
        %947 = vmatpush1.msra.mxu0 0.0
        %948 = vmatprep.subr.mxu0 0.0
        %949 = vmatpush1.msra.mxu0 0.0
        %950 = vmatprep.subr.mxu0 0.0
        %951 = vmatpush1.msra.mxu0 0.0
        %952 = vmatprep.subr.mxu0 0.0
        %953 = vmatpush1.msra.mxu0 0.0
        %954 = vmatprep.subr.mxu0 0.0
        %955 = vmatpush1.msra.mxu0 0.0
        %956 = vmatprep.subr.mxu0 0.0
        %957 = vmatpush1.msra.mxu0 0.0
        %958 = vmatprep.subr.mxu0 0.0
        %959 = vmatpush1.msra.mxu0 0.0
        %960 = vmatprep.subr.mxu0 0.0
        %961 = vmatpush1.msra.mxu0 0.0
        %962 = vmatprep.subr.mxu0 0.0
        %963 = vmatpush1.msra.mxu0 0.0
        %964 = vmatprep.subr.mxu0 0.0
        %965 = vmatpush1.msra.mxu0 0.0
        %966 = vmatprep.subr.mxu0 0.0
        %967 = vmatpush1.msra.mxu0 0.0
        %968 = vmatprep.subr.mxu0 0.0
        %969 = vmatpush1.msra.mxu0 0.0
        %970 = vmatprep.subr.mxu0 0.0
        %971 = vmatpush1.msra.mxu0 0.0
        %972 = vmatprep.subr.mxu0 0.0
        %973 = vmatpush1.msra.mxu0 0.0
        %974 = vmatprep.subr.mxu0 0.0
        %975 = vmatpush1.msra.mxu0 0.0
        %976 = vmatprep.subr.mxu0 0.0
        %977 = vmatpush1.msra.mxu0 0.0
        %978 = vmatprep.subr.mxu0 0.0
        %979 = vmatpush1.msra.mxu0 0.0
        %980 = vmatprep.subr.mxu0 0.0
        %981 = vmatpush1.msra.mxu0 0.0
        %982 = vmatprep.mubr.f32.mxu0 0.0
        %v983 = vand.u32 %v262, 4294901760
        %984 = vmatmul.mubr.f32.gmra.mrb[0].mxu0 %v983
        %v985 = vpop.f32.mrb[0].mxu0
        %v986 = vadd.f32 %v883, %v985
        %v987 = vpop.f32.mrb[0].mxu0
        %v988 = vadd.f32 %v885, %v987
        %989 = vmatprep.mubr.f32.mxu0 0.0
        %v990 = vand.u32 %v265, 4294901760
        %991 = vmatmul.mubr.f32.gmra.mrb[0].mxu0 %v990
        %v992 = vpop.f32.mrb[0].mxu0
        %v993 = vadd.f32 %v894, %v992
        %v994 = vpop.f32.mrb[0].mxu0
        %v995 = vadd.f32 %v896, %v994
        %996 = vdwg.mxu0
        %v997 = vand.u32 %v241, 4294901760
        %v998 = vsub.f32 %v241, %v997
        %999 = vmatprep.subr.mxu0 %v998
        %v1000 = vand.u32 %v240, 4294901760
        %v1001 = vsub.f32 %v240, %v1000
        %1002 = vmatpush1.msra.mxu0 %v1001
        %v1003 = vand.u32 %v245, 4294901760
        %v1004 = vsub.f32 %v245, %v1003
        %1005 = vmatprep.subr.mxu0 %v1004
        %v1006 = vand.u32 %v244, 4294901760
        %v1007 = vsub.f32 %v244, %v1006
        %1008 = vmatpush1.msra.mxu0 %v1007
        %1009 = vmatprep.subr.mxu0 0.0
        %1010 = vmatpush1.msra.mxu0 0.0
        %1011 = vmatprep.subr.mxu0 0.0
        %1012 = vmatpush1.msra.mxu0 0.0
        %1013 = vmatprep.subr.mxu0 0.0
        %1014 = vmatpush1.msra.mxu0 0.0
        %1015 = vmatprep.subr.mxu0 0.0
        %1016 = vmatpush1.msra.mxu0 0.0
        %1017 = vmatprep.subr.mxu0 0.0
        %1018 = vmatpush1.msra.mxu0 0.0
        %1019 = vmatprep.subr.mxu0 0.0
        %1020 = vmatpush1.msra.mxu0 0.0
        %1021 = vmatprep.subr.mxu0 0.0
        %1022 = vmatpush1.msra.mxu0 0.0
        %1023 = vmatprep.subr.mxu0 0.0
        %1024 = vmatpush1.msra.mxu0 0.0
        %1025 = vmatprep.subr.mxu0 0.0
        %1026 = vmatpush1.msra.mxu0 0.0
        %1027 = vmatprep.subr.mxu0 0.0
        %1028 = vmatpush1.msra.mxu0 0.0
        %1029 = vmatprep.subr.mxu0 0.0
        %1030 = vmatpush1.msra.mxu0 0.0
        %1031 = vmatprep.subr.mxu0 0.0
        %1032 = vmatpush1.msra.mxu0 0.0
        %1033 = vmatprep.subr.mxu0 0.0
        %1034 = vmatpush1.msra.mxu0 0.0
        %1035 = vmatprep.subr.mxu0 0.0
        %1036 = vmatpush1.msra.mxu0 0.0
        %1037 = vmatprep.subr.mxu0 0.0
        %1038 = vmatpush1.msra.mxu0 0.0
        %1039 = vmatprep.subr.mxu0 0.0
        %1040 = vmatpush1.msra.mxu0 0.0
        %1041 = vmatprep.subr.mxu0 0.0
        %1042 = vmatpush1.msra.mxu0 0.0
        %1043 = vmatprep.subr.mxu0 0.0
        %1044 = vmatpush1.msra.mxu0 0.0
        %1045 = vmatprep.subr.mxu0 0.0
        %1046 = vmatpush1.msra.mxu0 0.0
        %1047 = vmatprep.subr.mxu0 0.0
        %1048 = vmatpush1.msra.mxu0 0.0
        %1049 = vmatprep.subr.mxu0 0.0
        %1050 = vmatpush1.msra.mxu0 0.0
        %1051 = vmatprep.subr.mxu0 0.0
        %1052 = vmatpush1.msra.mxu0 0.0
        %1053 = vmatprep.subr.mxu0 0.0
        %1054 = vmatpush1.msra.mxu0 0.0
        %1055 = vmatprep.subr.mxu0 0.0
        %1056 = vmatpush1.msra.mxu0 0.0
        %1057 = vmatprep.subr.mxu0 0.0
        %1058 = vmatpush1.msra.mxu0 0.0
        %1059 = vmatprep.subr.mxu0 0.0
        %1060 = vmatpush1.msra.mxu0 0.0
        %1061 = vmatprep.subr.mxu0 0.0
        %1062 = vmatpush1.msra.mxu0 0.0
        %1063 = vmatprep.subr.mxu0 0.0
        %1064 = vmatpush1.msra.mxu0 0.0
        %1065 = vmatprep.subr.mxu0 0.0
        %1066 = vmatpush1.msra.mxu0 0.0
        %1067 = vmatprep.subr.mxu0 0.0
        %1068 = vmatpush1.msra.mxu0 0.0
        %1069 = vmatprep.mubr.f32.mxu0 0.0
        %v1070 = vand.u32 %v262, 4294901760
        %v1071 = vsub.f32 %v262, %v1070
        %1072 = vmatmul.mubr.f32.gmra.mrb[0].mxu0 %v1071
        %v1073 = vpop.f32.mrb[0].mxu0
        %v1074 = vadd.f32 %v986, %v1073
        %v1075 = vpop.f32.mrb[0].mxu0
        %v1076 = vadd.f32 %v988, %v1075
        %1077 = vmatprep.mubr.f32.mxu0 0.0
        %v1078 = vand.u32 %v265, 4294901760
        %v1079 = vsub.f32 %v265, %v1078
        %1080 = vmatmul.mubr.f32.gmra.mrb[0].mxu0 %v1079
        %v1081 = vpop.f32.mrb[0].mxu0
        %v1082 = vadd.f32 %v993, %v1081
        %v1083 = vpop.f32.mrb[0].mxu0
        %v1084 = vadd.f32 %v995, %v1083
        %1085 = vdwg.mxu0
        %v1086 = vand.u32 %v241, 4294901760
        %1087 = vmatprep.subr.mxu0 %v1086
        %v1088 = vand.u32 %v240, 4294901760
        %1089 = vmatpush1.msra.mxu0 %v1088
        %v1090 = vand.u32 %v245, 4294901760
        %1091 = vmatprep.subr.mxu0 %v1090
        %v1092 = vand.u32 %v244, 4294901760
        %1093 = vmatpush1.msra.mxu0 %v1092
        %1094 = vmatprep.subr.mxu0 0.0
        %1095 = vmatpush1.msra.mxu0 0.0
        %1096 = vmatprep.subr.mxu0 0.0
        %1097 = vmatpush1.msra.mxu0 0.0
        %1098 = vmatprep.subr.mxu0 0.0
        %1099 = vmatpush1.msra.mxu0 0.0
        %1100 = vmatprep.subr.mxu0 0.0
        %1101 = vmatpush1.msra.mxu0 0.0
        %1102 = vmatprep.subr.mxu0 0.0
        %1103 = vmatpush1.msra.mxu0 0.0
        %1104 = vmatprep.subr.mxu0 0.0
        %1105 = vmatpush1.msra.mxu0 0.0
        %1106 = vmatprep.subr.mxu0 0.0
        %1107 = vmatpush1.msra.mxu0 0.0
        %1108 = vmatprep.subr.mxu0 0.0
        %1109 = vmatpush1.msra.mxu0 0.0
        %1110 = vmatprep.subr.mxu0 0.0
        %1111 = vmatpush1.msra.mxu0 0.0
        %1112 = vmatprep.subr.mxu0 0.0
        %1113 = vmatpush1.msra.mxu0 0.0
        %1114 = vmatprep.subr.mxu0 0.0
        %1115 = vmatpush1.msra.mxu0 0.0
        %1116 = vmatprep.subr.mxu0 0.0
        %1117 = vmatpush1.msra.mxu0 0.0
        %1118 = vmatprep.subr.mxu0 0.0
        %1119 = vmatpush1.msra.mxu0 0.0
        %1120 = vmatprep.subr.mxu0 0.0
        %1121 = vmatpush1.msra.mxu0 0.0
        %1122 = vmatprep.subr.mxu0 0.0
        %1123 = vmatpush1.msra.mxu0 0.0
        %1124 = vmatprep.subr.mxu0 0.0
        %1125 = vmatpush1.msra.mxu0 0.0
        %1126 = vmatprep.subr.mxu0 0.0
        %1127 = vmatpush1.msra.mxu0 0.0
        %1128 = vmatprep.subr.mxu0 0.0
        %1129 = vmatpush1.msra.mxu0 0.0
        %1130 = vmatprep.subr.mxu0 0.0
        %1131 = vmatpush1.msra.mxu0 0.0
        %1132 = vmatprep.subr.mxu0 0.0
        %1133 = vmatpush1.msra.mxu0 0.0
        %1134 = vmatprep.subr.mxu0 0.0
        %1135 = vmatpush1.msra.mxu0 0.0
        %1136 = vmatprep.subr.mxu0 0.0
        %1137 = vmatpush1.msra.mxu0 0.0
        %1138 = vmatprep.subr.mxu0 0.0
        %1139 = vmatpush1.msra.mxu0 0.0
        %1140 = vmatprep.subr.mxu0 0.0
        %1141 = vmatpush1.msra.mxu0 0.0
        %1142 = vmatprep.subr.mxu0 0.0
        %1143 = vmatpush1.msra.mxu0 0.0
        %1144 = vmatprep.subr.mxu0 0.0
        %1145 = vmatpush1.msra.mxu0 0.0
        %1146 = vmatprep.subr.mxu0 0.0
        %1147 = vmatpush1.msra.mxu0 0.0
        %1148 = vmatprep.subr.mxu0 0.0
        %1149 = vmatpush1.msra.mxu0 0.0
        %1150 = vmatprep.subr.mxu0 0.0
        %1151 = vmatpush1.msra.mxu0 0.0
        %1152 = vmatprep.subr.mxu0 0.0
        %1153 = vmatpush1.msra.mxu0 0.0
        %1154 = vmatprep.mubr.f32.mxu0 0.0
        %v1155 = vand.u32 %v262, 4294901760
        %v1156 = vsub.f32 %v262, %v1155
        %v1157 = vand.u32 %v1156, 4294901760
        %1158 = vmatmul.mubr.f32.gmra.mrb[0].mxu0 %v1157
        %v1159 = vpop.f32.mrb[0].mxu0
        %v1160 = vadd.f32 %v1074, %v1159
        %v1161 = vpop.f32.mrb[0].mxu0
        %v1162 = vadd.f32 %v1076, %v1161
        %1163 = vmatprep.mubr.f32.mxu0 0.0
        %v1164 = vand.u32 %v265, 4294901760
        %v1165 = vsub.f32 %v265, %v1164
        %v1166 = vand.u32 %v1165, 4294901760
        %1167 = vmatmul.mubr.f32.gmra.mrb[0].mxu0 %v1166
        %v1168 = vpop.f32.mrb[0].mxu0
        %v1169 = vadd.f32 %v1082, %v1168
        %v1170 = vpop.f32.mrb[0].mxu0
        %v1171 = vadd.f32 %v1084, %v1170
        %1172 = vdwg.mxu0
        %v1173 = vand.u32 %v241, 4294901760
        %v1174 = vsub.f32 %v241, %v1173
        %v1175 = vand.u32 %v1174, 4294901760
        %1176 = vmatprep.subr.mxu0 %v1175
        %v1177 = vand.u32 %v240, 4294901760
        %v1178 = vsub.f32 %v240, %v1177
        %v1179 = vand.u32 %v1178, 4294901760
        %1180 = vmatpush1.msra.mxu0 %v1179
        %v1181 = vand.u32 %v245, 4294901760
        %v1182 = vsub.f32 %v245, %v1181
        %v1183 = vand.u32 %v1182, 4294901760
        %1184 = vmatprep.subr.mxu0 %v1183
        %v1185 = vand.u32 %v244, 4294901760
        %v1186 = vsub.f32 %v244, %v1185
        %v1187 = vand.u32 %v1186, 4294901760
        %1188 = vmatpush1.msra.mxu0 %v1187
        %1189 = vmatprep.subr.mxu0 0.0
        %1190 = vmatpush1.msra.mxu0 0.0
        %1191 = vmatprep.subr.mxu0 0.0
        %1192 = vmatpush1.msra.mxu0 0.0
        %1193 = vmatprep.subr.mxu0 0.0
        %1194 = vmatpush1.msra.mxu0 0.0
        %1195 = vmatprep.subr.mxu0 0.0
        %1196 = vmatpush1.msra.mxu0 0.0
        %1197 = vmatprep.subr.mxu0 0.0
        %1198 = vmatpush1.msra.mxu0 0.0
        %1199 = vmatprep.subr.mxu0 0.0
        %1200 = vmatpush1.msra.mxu0 0.0
        %1201 = vmatprep.subr.mxu0 0.0
        %1202 = vmatpush1.msra.mxu0 0.0
        %1203 = vmatprep.subr.mxu0 0.0
        %1204 = vmatpush1.msra.mxu0 0.0
        %1205 = vmatprep.subr.mxu0 0.0
        %1206 = vmatpush1.msra.mxu0 0.0
        %1207 = vmatprep.subr.mxu0 0.0
        %1208 = vmatpush1.msra.mxu0 0.0
        %1209 = vmatprep.subr.mxu0 0.0
        %1210 = vmatpush1.msra.mxu0 0.0
        %1211 = vmatprep.subr.mxu0 0.0
        %1212 = vmatpush1.msra.mxu0 0.0
        %1213 = vmatprep.subr.mxu0 0.0
        %1214 = vmatpush1.msra.mxu0 0.0
        %1215 = vmatprep.subr.mxu0 0.0
        %1216 = vmatpush1.msra.mxu0 0.0
        %1217 = vmatprep.subr.mxu0 0.0
        %1218 = vmatpush1.msra.mxu0 0.0
        %1219 = vmatprep.subr.mxu0 0.0
        %1220 = vmatpush1.msra.mxu0 0.0
        %1221 = vmatprep.subr.mxu0 0.0
        %1222 = vmatpush1.msra.mxu0 0.0
        %1223 = vmatprep.subr.mxu0 0.0
        %1224 = vmatpush1.msra.mxu0 0.0
        %1225 = vmatprep.subr.mxu0 0.0
        %1226 = vmatpush1.msra.mxu0 0.0
        %1227 = vmatprep.subr.mxu0 0.0
        %1228 = vmatpush1.msra.mxu0 0.0
        %1229 = vmatprep.subr.mxu0 0.0
        %1230 = vmatpush1.msra.mxu0 0.0
        %1231 = vmatprep.subr.mxu0 0.0
        %1232 = vmatpush1.msra.mxu0 0.0
        %1233 = vmatprep.subr.mxu0 0.0
        %1234 = vmatpush1.msra.mxu0 0.0
        %1235 = vmatprep.subr.mxu0 0.0
        %1236 = vmatpush1.msra.mxu0 0.0
        %1237 = vmatprep.subr.mxu0 0.0
        %1238 = vmatpush1.msra.mxu0 0.0
        %1239 = vmatprep.subr.mxu0 0.0
        %1240 = vmatpush1.msra.mxu0 0.0
        %1241 = vmatprep.subr.mxu0 0.0
        %1242 = vmatpush1.msra.mxu0 0.0
        %1243 = vmatprep.subr.mxu0 0.0
        %1244 = vmatpush1.msra.mxu0 0.0
        %1245 = vmatprep.subr.mxu0 0.0
        %1246 = vmatpush1.msra.mxu0 0.0
        %1247 = vmatprep.subr.mxu0 0.0
        %1248 = vmatpush1.msra.mxu0 0.0
        %1249 = vmatprep.mubr.f32.mxu0 0.0
        %v1250 = vand.u32 %v262, 4294901760
        %1251 = vmatmul.mubr.f32.gmra.mrb[0].mxu0 %v1250
        %v1252 = vpop.f32.mrb[0].mxu0
        %v1253 = vadd.f32 %v1160, %v1252
        %v1254 = vpop.f32.mrb[0].mxu0
        %v1255 = vadd.f32 %v1162, %v1254
        %1256 = vmatprep.mubr.f32.mxu0 0.0
        %v1257 = vand.u32 %v265, 4294901760
        %1258 = vmatmul.mubr.f32.gmra.mrb[0].mxu0 %v1257
        %v1259 = vpop.f32.mrb[0].mxu0
        %v1260 = vadd.f32 %v1169, %v1259
        %v1261 = vpop.f32.mrb[0].mxu0
        %v1262 = vadd.f32 %v1171, %v1261
        %1263 = vdwg.mxu0
        %v1264 = vand.u32 %v241, 4294901760
        %1265 = vmatprep.subr.mxu0 %v1264
        %v1266 = vand.u32 %v240, 4294901760
        %1267 = vmatpush1.msra.mxu0 %v1266
        %v1268 = vand.u32 %v245, 4294901760
        %1269 = vmatprep.subr.mxu0 %v1268
        %v1270 = vand.u32 %v244, 4294901760
        %1271 = vmatpush1.msra.mxu0 %v1270
        %1272 = vmatprep.subr.mxu0 0.0
        %1273 = vmatpush1.msra.mxu0 0.0
        %1274 = vmatprep.subr.mxu0 0.0
        %1275 = vmatpush1.msra.mxu0 0.0
        %1276 = vmatprep.subr.mxu0 0.0
        %1277 = vmatpush1.msra.mxu0 0.0
        %1278 = vmatprep.subr.mxu0 0.0
        %1279 = vmatpush1.msra.mxu0 0.0
        %1280 = vmatprep.subr.mxu0 0.0
        %1281 = vmatpush1.msra.mxu0 0.0
        %1282 = vmatprep.subr.mxu0 0.0
        %1283 = vmatpush1.msra.mxu0 0.0
        %1284 = vmatprep.subr.mxu0 0.0
        %1285 = vmatpush1.msra.mxu0 0.0
        %1286 = vmatprep.subr.mxu0 0.0
        %1287 = vmatpush1.msra.mxu0 0.0
        %1288 = vmatprep.subr.mxu0 0.0
        %1289 = vmatpush1.msra.mxu0 0.0
        %1290 = vmatprep.subr.mxu0 0.0
        %1291 = vmatpush1.msra.mxu0 0.0
        %1292 = vmatprep.subr.mxu0 0.0
        %1293 = vmatpush1.msra.mxu0 0.0
        %1294 = vmatprep.subr.mxu0 0.0
        %1295 = vmatpush1.msra.mxu0 0.0
        %1296 = vmatprep.subr.mxu0 0.0
        %1297 = vmatpush1.msra.mxu0 0.0
        %1298 = vmatprep.subr.mxu0 0.0
        %1299 = vmatpush1.msra.mxu0 0.0
        %1300 = vmatprep.subr.mxu0 0.0
        %1301 = vmatpush1.msra.mxu0 0.0
        %1302 = vmatprep.subr.mxu0 0.0
        %1303 = vmatpush1.msra.mxu0 0.0
        %1304 = vmatprep.subr.mxu0 0.0
        %1305 = vmatpush1.msra.mxu0 0.0
        %1306 = vmatprep.subr.mxu0 0.0
        %1307 = vmatpush1.msra.mxu0 0.0
        %1308 = vmatprep.subr.mxu0 0.0
        %1309 = vmatpush1.msra.mxu0 0.0
        %1310 = vmatprep.subr.mxu0 0.0
        %1311 = vmatpush1.msra.mxu0 0.0
        %1312 = vmatprep.subr.mxu0 0.0
        %1313 = vmatpush1.msra.mxu0 0.0
        %1314 = vmatprep.subr.mxu0 0.0
        %1315 = vmatpush1.msra.mxu0 0.0
        %1316 = vmatprep.subr.mxu0 0.0
        %1317 = vmatpush1.msra.mxu0 0.0
        %1318 = vmatprep.subr.mxu0 0.0
        %1319 = vmatpush1.msra.mxu0 0.0
        %1320 = vmatprep.subr.mxu0 0.0
        %1321 = vmatpush1.msra.mxu0 0.0
        %1322 = vmatprep.subr.mxu0 0.0
        %1323 = vmatpush1.msra.mxu0 0.0
        %1324 = vmatprep.subr.mxu0 0.0
        %1325 = vmatpush1.msra.mxu0 0.0
        %1326 = vmatprep.subr.mxu0 0.0
        %1327 = vmatpush1.msra.mxu0 0.0
        %1328 = vmatprep.subr.mxu0 0.0
        %1329 = vmatpush1.msra.mxu0 0.0
        %1330 = vmatprep.subr.mxu0 0.0
        %1331 = vmatpush1.msra.mxu0 0.0
        %1332 = vmatprep.mubr.f32.mxu0 0.0
        %v1333 = vand.u32 %v262, 4294901760
        %1334 = vmatmul.mubr.f32.gmra.mrb[0].mxu0 %v1333
        %v1335 = vpop.f32.mrb[0].mxu0
        %v1336 = vadd.f32 %v1253, %v1335
        %v1337 = vpop.f32.mrb[0].mxu0
        %v1338 = vadd.f32 %v1255, %v1337
        %1339 = vmatprep.mubr.f32.mxu0 0.0
        %v1340 = vand.u32 %v265, 4294901760
        %1341 = vmatmul.mubr.f32.gmra.mrb[0].mxu0 %v1340
        %v1342 = vpop.f32.mrb[0].mxu0
        %v1343 = vadd.f32 %v1260, %v1342
        %v1344 = vpop.f32.mrb[0].mxu0
        %v1345 = vadd.f32 %v1262, %v1344
        %1346 = vdwg.mxu0
        %vm1347 = vcmp.gt.f32.partialorder %v796, 0.0
        %vm1348 = vcmp.gt.f32.partialorder %v798, 0.0
        %vm1349 = vcmp.gt.f32.partialorder %v1336, 0.0
        %vm1350 = vcmp.gt.f32.partialorder %v1338, 0.0
        %vm1351 = vcmp.gt.f32.partialorder %v803, 0.0
        %vm1352 = vcmp.gt.f32.partialorder %v805, 0.0
        %vm1353 = vcmp.gt.f32.partialorder %v1343, 0.0
        %vm1354 = vcmp.gt.f32.partialorder %v1345, 0.0
        %v1355 = vld [vmem:[#allocation2] sm:$0x1]
        %v1357 = vlaneseq
        %v1358 = vshrl.u32 %v1357, 7
        %v1359 = vsub.s32 0, %v1358
        %v1360 = vrot.slane %v1355, %v1359
        %1361 = vset.pattern.permute.xlu0 0
        %1362 = vperm.xlu0 %1361, %v1360
        %v1363 = vpop.permute.xlu0 %1362
        %v1365 = vmul.f32 %v1363, %v796
        %v1366 = vmul.f32 %v1363, %v798
        %v1367 = vmul.f32 %v1363, %v1336
        %v1368 = vmul.f32 %v1363, %v1338
        %v1369 = vmul.f32 %v1363, %v803
        %v1370 = vmul.f32 %v1363, %v805
        %v1371 = vmul.f32 %v1363, %v1343
        %v1372 = vmul.f32 %v1363, %v1345
        %v1373 = vsel %vm1347, %v796, %v1365
        %v1374 = vsel %vm1348, %v798, %v1366
        %v1375 = vsel %vm1349, %v1336, %v1367
        %v1376 = vsel %vm1350, %v1338, %v1368
        %v1377 = vsel %vm1351, %v803, %v1369
        %v1378 = vsel %vm1352, %v805, %v1370
        %v1379 = vsel %vm1353, %v1343, %v1371
        %v1380 = vsel %vm1354, %v1345, %v1372
        %1381 = vst [vmem:[%s235] sm:$0xff] %v1373
        %1382 = vst [vmem:[%s235 + $0x8] sm:$0xff] %v1374
        %1383 = vst [vmem:[%s235 + $0x10] sm:$0xff] %v1375
        %1384 = vst [vmem:[%s235 + $0x18] sm:$0xff] %v1376
        %1385 = vst [vmem:[%s235 + $0x20] sm:$0xff] %v1377
        %1386 = vst [vmem:[%s235 + $0x28] sm:$0xff] %v1378
        %1387 = vst [vmem:[%s235 + $0x30] sm:$0xff] %v1379
        %1388 = vst [vmem:[%s235 + $0x38] sm:$0xff] %v1380
        %s1389 = sand.u32 %s136, 1
        %s1390 = scalar_lea.sflag [#allocation5], %s1389
        %s1391 = sand.u32 %s136, 1
        %s1392 = smul.addr %s1391, 64
        %s1393 = scalar_lea.vmem [#allocation6], %s1392
        // Predicated region
        $region41: #{tpu_custom_call.1} parent=35 // pred_check
          %p1394 = pneg %p146
        $region42: #{tpu_custom_call.1} parent=35 // pred_check_branch
          %1396 = sbr.rel (%p1394) target = $region44
        $region43: #{tpu_custom_call.1} parent=35 // pred_region
          %s1397 = smul.u32 4, %s28
          %s1399 = ssub.s32 1024, 1024
          %1400 = vsyncadd %s1390, %s1399
          %s1401 = smul.addr %s27, 8
          %s1402 = sadd.s32 %s1397, %s1401
          %s1403 = smul.addr %s1402, 128
          %s1404 = scalar_lea.hbm %s4, %s1403
          %s1405 = sshll.u32 %s1393, 4
          %s1406 = int_to_ptr.vmem [resolvable:$true] %s1405
          %1411 = dma.vmem_to_hbm [thread:$0]  %s1406, 1024, %s1404, %s1390, 512, 512, 32
        $region44: #{tpu_custom_call.1} parent=35 // pred_fallthru
          _
      $region36: #{tpu_custom_call.1} parent=5 // pred_fallthru
        _
      %p1412 = scmp.le.s32.totalorder 2, %s18
      // Predicated region
      $region45: #{tpu_custom_call.1} parent=5 // pred_check
        %p1413 = pneg %p1412
      $region46: #{tpu_custom_call.1} parent=5 // pred_check_branch
        %1415 = sbr.rel (%p1413) target = $region48
      $region47: #{tpu_custom_call.1} parent=5 // pred_region
        %s1416 = ssub.s32 %s18, 2
        // Predicated region
        $region49: #{tpu_custom_call.1} parent=47 // pred_check
          %p1417 = pneg %p152
        $region50: #{tpu_custom_call.1} parent=47 // pred_check_branch
          %1419 = sbr.rel (%p1417) target = $region52
        $region51: #{tpu_custom_call.1} parent=47 // pred_region
          %s1420 = sand.u32 %s137, 1
          %s1421 = scalar_lea.sflag [#allocation5], %s1420
          %s1422 = sand.u32 %s137, 1
          %s1423 = smul.addr %s1422, 64
          %s1424 = scalar_lea.vmem [#allocation6], %s1423
          %1425 = dma.done %s1421, 1024
        $region52: #{tpu_custom_call.1} parent=47 // pred_fallthru
          _
      $region48: #{tpu_custom_call.1} parent=5 // pred_fallthru
        _
    $region6: #{tpu_custom_call.1} parent=1 // loop_footer
      %s22 = sadd.s32 1, %s18
    $region7: #{tpu_custom_call.1} parent=1 // loop_footer_branch
      %17 = sbr.rel target = $region3
    $region8: #{tpu_custom_call.1} parent=1 // loop_exit
      _
    %1426 = vsyncpa [#allocation4], 1
    %s1427 = scalar_lea.sflag [#allocation4], 1
    %1428 = vsyncpa %s1427, 1
    %1429 = vsyncpa [#allocation5], 1
    %s1430 = scalar_lea.sflag [#allocation5], 1
    %1431 = vsyncpa %s1430, 1

</llo_original>
